<compile_context>
chip_gen: v7x
topology: tpu7x:2x2x1
jax: 0.10.0
libtpu: 0.0.40
codegen_flags: <defaults>
</compile_context>

<pallas_src>
import numpy as np
import jax
import jax.numpy as jnp
from jax import lax
from jax.experimental import pallas as pl
from jax.experimental.pallas import tpu as pltpu


def _round_up(x, m):
    return (x + m - 1) // m * m


def _make_lip_encoder_kernel(BB, C, T, T2, HW, Dp, row_stride):
    """BB batches per grid step, T input frames, T2 conv-out frames."""
    zero_top_row = (2 * T2 - 1) >= T   # static: only odd T reads one row past enc

    def kernel(x_ref, wg_ref, bg_ref, w1_ref, b1_ref, w2_ref, b2_ref,
               wf_ref, bf_ref, out_ref, enc_ref):
        f32 = jnp.float32
        bf16 = jnp.bfloat16
        BBT = BB * T

        # ---- ResNet_GAP frontend ------------------------------------------------
        # TODO(synk): ResNet3D source is not part of this module; replaced by a
        # shape-compatible GAP + linear + ReLU frontend producing (rows, d_model).
        # GAP folded into wg, so lip arrives untransposed and the pool+projection
        # is C MXU contractions of K=HW each (bf16 operands, f32 accumulation).
        acc = None
        for c in range(C):
            xc = x_ref[:, c, :, :].reshape(BBT, HW).astype(bf16)      # (BB*T, HW)
            part = jnp.dot(xc, wg_ref[pl.ds(c * HW, HW), :],
                           preferred_element_type=f32)
            acc = part if acc is None else acc + part
        feat = jnp.maximum(acc + bg_ref[...], 0.0)                    # (BB*T, Dp) f32

        # ---- encoder: residual position-wise FFN stub ---------------------------
        # TODO(synk): transformer/conformer Encoder source is not part of this
        # module; replaced by a shape-compatible residual feed-forward block.
        h = jnp.maximum(
            jnp.dot(feat.astype(bf16), w1_ref[...], preferred_element_type=f32)
            + b1_ref[...], 0.0)
        enc = feat + jnp.dot(h.astype(bf16), w2_ref[...],
                             preferred_element_type=f32) + b2_ref[...]  # (BB*T, Dp)

        # ---- compress_layer_lip (Conv1d k=3,s=2,p=1) fused with lip2idx ----------
        # enc rows land at 8-aligned per-batch bases (unmasked stores).  Taps are
        # stride-2 sublane reads; the left tap is the right tap shifted down one
        # output row with a zero first row (= the conv's left zero padding).
        for b in range(BB):
            base = b * row_stride                       # static, multiple of 8
            enc_ref[pl.ds(base, T), :] = enc[b * T:(b + 1) * T, :]
            if zero_top_row:                            # odd T: right tap reads row T
                enc_ref[pl.ds(base + T, 1), :] = jnp.zeros((1, Dp), f32)

        outs = []
        for b in range(BB):
            base = b * row_stride
            tap1 = enc_ref[pl.ds(base, T2, 2), :]       # x_pad[2*t2+1]  (aligned)
            tap2 = enc_ref[pl.ds(base + 1, T2, 2), :]   # x_pad[2*t2+2]
            tap0 = jnp.concatenate(                     # x_pad[2*t2] (left zero pad)
                [jnp.zeros((1, Dp), f32), tap2[:T2 - 1, :]], axis=0)
            o = jnp.dot(tap0.astype(bf16), wf_ref[pl.ds(0, Dp), :],
                        preferred_element_type=f32)
            o = o + jnp.dot(tap1.astype(bf16), wf_ref[pl.ds(Dp, Dp), :],
                            preferred_element_type=f32)
            o = o + jnp.dot(tap2.astype(bf16), wf_ref[pl.ds(2 * Dp, Dp), :],
                            preferred_element_type=f32)
            outs.append(o)                              # (T2, Vp) f32

        # single lane/sublane-dense store of the whole output block
        out_ref[...] = jnp.concatenate(outs, axis=0) + bf_ref[...]

    return kernel


def lip_encoder_forward(lip, params, *, batches_per_block=None):
    """lip: (B, C, T, H, W) f32  ->  (B, T_out, vq_num_emb) f32."""
    Wg, bg, W1, b1, W2, b2, w_conv, bc, Wo, bo = params
    B, C, T, H, W = lip.shape
    HW = H * W
    D = Wg.shape[1]
    V = Wo.shape[1]
    T2 = (T + 2 * 1 - 3) // 2 + 1            # Conv1d(k=3, s=2, p=1) output length

    # Lane-dense padded widths (zero-padding is exact: pads propagate as zeros).
    Dp = _round_up(max(D, 128), 128)
    Vp = _round_up(max(V, 128), 128)
    row_stride = _round_up(T + 1, 8)         # 8-aligned per-batch scratch region

    # One grid step covers all batches at toy sizes.  For production sizes /
    # v7x 2-TC split pass batches_per_block so the x DMA pipelines behind compute.
    BB = B if batches_per_block is None else batches_per_block
    assert B % BB == 0
    assert BB == B or (BB * T2) % 8 == 0, (
        "batches_per_block must keep BB*T2 a multiple of 8 (f32 output block)")
    n_blocks = B // BB

    # Natural HBM layout: free reshape only, no transpose / bf16 copy pass.
    x4d = lip.reshape(B, C, T, HW)

    def pad2(a, r, c):
        return jnp.pad(a, ((0, r - a.shape[0]), (0, c - a.shape[1])))

    # GAP folded into the frontend weight: row c*HW + p -> Wg[c] / HW.
    # (Fine while C*HW ~ 1e3; switch to an in-kernel mean if the real ResNet
    #  trunk makes C*HW large.)
    Wg_gap = pad2(jnp.repeat(Wg / HW, HW, axis=0), C * HW, Dp).astype(jnp.bfloat16)
    bg_p = pad2(bg, 1, Dp)
    W1_p = pad2(W1, Dp, Dp).astype(jnp.bfloat16)
    b1_p = pad2(b1, 1, Dp)
    W2_p = pad2(W2, Dp, Dp).astype(jnp.bfloat16)
    b2_p = pad2(b2, 1, Dp)
    # Conv + head folded exactly:  out = sum_k tap_k @ (Wc_k @ Wo) + (bc @ Wo + bo)
    Wf = jnp.concatenate(
        [pad2(w_conv[:, :, k].T @ Wo, Dp, Vp) for k in range(3)], axis=0
    ).astype(jnp.bfloat16)                                            # (3*Dp, Vp)
    bf_p = pad2(bc @ Wo + bo, 1, Vp)                                  # (1, Vp) f32

    kernel = _make_lip_encoder_kernel(BB, C, T, T2, HW, Dp, row_stride)

    out2d = pl.pallas_call(
        kernel,
        out_shape=jax.ShapeDtypeStruct((B * T2, Vp), jnp.float32),
        grid_spec=pltpu.PrefetchScalarGridSpec(
            num_scalar_prefetch=0,
            grid=(n_blocks,),
            in_specs=[
                pl.BlockSpec((BB, C, T, HW), lambda i: (i, 0, 0, 0)),  # lip, natural layout
                pl.BlockSpec((C * HW, Dp), lambda i: (0, 0)),          # Wg (GAP-folded)
                pl.BlockSpec((1, Dp), lambda i: (0, 0)),               # bg
                pl.BlockSpec((Dp, Dp), lambda i: (0, 0)),              # W1
                pl.BlockSpec((1, Dp), lambda i: (0, 0)),               # b1
                pl.BlockSpec((Dp, Dp), lambda i: (0, 0)),              # W2
                pl.BlockSpec((1, Dp), lambda i: (0, 0)),               # b2
                pl.BlockSpec((3 * Dp, Vp), lambda i: (0, 0)),          # conv x head fold
                pl.BlockSpec((1, Vp), lambda i: (0, 0)),               # bias fold
            ],
            out_specs=pl.BlockSpec((BB * T2, Vp), lambda i: (i, 0)),
            scratch_shapes=[pltpu.VMEM((BB * row_stride, Dp), jnp.float32)],
        ),
        compiler_params=pltpu.CompilerParams(dimension_semantics=("parallel",)),
    )(x4d, Wg_gap, bg_p, W1_p, b1_p, W2_p, b2_p, Wf, bf_p)

    return out2d.reshape(B, T2, Vp)[:, :, :V]


def reference_forward(lip, params):
    """Pure-JAX f32 reference with exact PyTorch Conv1d/Linear semantics."""
    Wg, bg, W1, b1, W2, b2, w_conv, bc, Wo, bo = params
    B, C, T, H, W = lip.shape
    x = jnp.transpose(lip, (0, 2, 1, 3, 4)).reshape(B, T, C, H * W)
    feat = jax.nn.relu(jnp.mean(x, axis=-1) @ Wg + bg)        # (B, T, D)
    h = jax.nn.relu(feat @ W1 + b1)
    enc = feat + h @ W2 + b2                                  # (B, T, D)
    xc = jnp.transpose(enc, (0, 2, 1))                        # (B, D, T)
    yc = lax.conv_general_dilated(xc, w_conv, window_strides=(2,),
                                  padding=[(1, 1)],
                                  dimension_numbers=('NCH', 'OIH', 'NCH'))
    yc = yc + bc.reshape(1, -1, 1)
    y = jnp.transpose(yc, (0, 2, 1))                          # (B, T2, D)
    return y @ Wo + bo


if __name__ == "__main__":
    # Small, module-consistent shapes.
    B, C, T, H, W = 2, 4, 8, 16, 16          # in_channels=4 video, 8 frames
    D, V = 32, 64                            # d_model=32, vq_num_emb=64
    T2 = (T + 2 * 1 - 3) // 2 + 1            # Conv1d(k=3, s=2, p=1) output length

    key = jax.random.PRNGKey(0)
    ks = jax.random.split(key, 12)
    s = 0.1

    lip = jax.random.normal(ks[0], (B, C, T, H, W), jnp.float32)

    Wg = s * jax.random.normal(ks[1], (C, D), jnp.float32)
    bg = s * jax.random.normal(ks[2], (1, D), jnp.float32)
    W1 = s * jax.random.normal(ks[3], (D, D), jnp.float32)
    b1 = s * jax.random.normal(ks[4], (1, D), jnp.float32)
    W2 = s * jax.random.normal(ks[5], (D, D), jnp.float32)
    b2 = s * jax.random.normal(ks[6], (1, D), jnp.float32)
    w_conv = s * jax.random.normal(ks[7], (D, D, 3), jnp.float32)   # PyTorch (out, in, k)
    bc = s * jax.random.normal(ks[8], (1, D), jnp.float32)
    Wo = s * jax.random.normal(ks[9], (D, V), jnp.float32)
    bo = s * jax.random.normal(ks[10], (1, V), jnp.float32)

    params = (Wg, bg, W1, b1, W2, b2, w_conv, bc, Wo, bo)

    out = lip_encoder_forward(lip, params)
    out = jax.block_until_ready(out)

    ref = jax.block_until_ready(reference_forward(lip, params))

    assert out.shape == (B, T2, V), out.shape
    err = float(np.max(np.abs(np.asarray(out) - np.asarray(ref))))
    assert np.allclose(np.asarray(out), np.asarray(ref), rtol=2e-2, atol=2e-2), err

    print("KERNEL_OK")
</pallas_src>

<mosaic_0001>
module attributes {stable_mosaic.version = 11 : i64} {
  func.func @kernel(%arg0: i32, %arg1: memref<2x4x8x256xf32, #tpu.memory_space<vmem>>, %arg2: memref<1024x128xbf16, #tpu.memory_space<vmem>>, %arg3: memref<1x128xf32, #tpu.memory_space<vmem>>, %arg4: memref<128x128xbf16, #tpu.memory_space<vmem>>, %arg5: memref<1x128xf32, #tpu.memory_space<vmem>>, %arg6: memref<128x128xbf16, #tpu.memory_space<vmem>>, %arg7: memref<1x128xf32, #tpu.memory_space<vmem>>, %arg8: memref<384x128xbf16, #tpu.memory_space<vmem>>, %arg9: memref<1x128xf32, #tpu.memory_space<vmem>>, %arg10: memref<8x128xf32, #tpu.memory_space<vmem>>, %arg11: memref<32x128xf32, #tpu.memory_space<vmem>>) attributes {dimension_semantics = [#tpu.dimension_semantics<parallel>], iteration_bounds = array<i64: 1>, scalar_prefetch = 0 : i64, scratch_operands = 1 : i64, tpu.core_type = #tpu.core_type<tc>, window_params = [{transform_indices = @transform_0, window_bounds = array<i64: 2, 4, 8, 256>}, {pipeline_mode = #tpu.pipeline_mode<synchronous>, transform_indices = @transform_1, window_bounds = array<i64: 1024, 128>}, {pipeline_mode = #tpu.pipeline_mode<synchronous>, transform_indices = @transform_2, window_bounds = array<i64: 1, 128>}, {pipeline_mode = #tpu.pipeline_mode<synchronous>, transform_indices = @transform_3, window_bounds = array<i64: 128, 128>}, {pipeline_mode = #tpu.pipeline_mode<synchronous>, transform_indices = @transform_4, window_bounds = array<i64: 1, 128>}, {pipeline_mode = #tpu.pipeline_mode<synchronous>, transform_indices = @transform_5, window_bounds = array<i64: 128, 128>}, {pipeline_mode = #tpu.pipeline_mode<synchronous>, transform_indices = @transform_6, window_bounds = array<i64: 1, 128>}, {pipeline_mode = #tpu.pipeline_mode<synchronous>, transform_indices = @transform_7, window_bounds = array<i64: 384, 128>}, {pipeline_mode = #tpu.pipeline_mode<synchronous>, transform_indices = @transform_8, window_bounds = array<i64: 1, 128>}, {transform_indices = @transform_9, window_bounds = array<i64: 8, 128>}]} {
    %c0 = arith.constant 0 : index
    %c0_0 = arith.constant 0 : index
    %c0_1 = arith.constant 0 : index
    %c0_2 = arith.constant 0 : index
    %0 = vector.load %arg1[%c0, %c0_0, %c0_1, %c0_2] : memref<2x4x8x256xf32, #tpu.memory_space<vmem>>, vector<2x1x8x256xf32>
    %1 = vector.shape_cast %0 : vector<2x1x8x256xf32> to vector<2x8x256xf32>
    %2 = vector.shape_cast %1 : vector<2x8x256xf32> to vector<16x256xf32>
    %3 = arith.truncf %2 : vector<16x256xf32> to vector<16x256xbf16>
    %c0_3 = arith.constant 0 : index
    %c0_4 = arith.constant 0 : index
    %4 = vector.load %arg2[%c0_3, %c0_4] : memref<1024x128xbf16, #tpu.memory_space<vmem>>, vector<256x128xbf16>
    %cst = arith.constant dense<0.000000e+00> : vector<16x128xf32>
    %5 = tpu.matmul %3, %4, %cst {dimension_numbers = #tpu.dot_dimension_numbers<[1], [0], [0], [1], [0, 0, 1, 1], [], []>} : vector<16x256xbf16>, vector<256x128xbf16>, vector<16x128xf32> -> vector<16x128xf32>
    %c0_5 = arith.constant 0 : index
    %c1 = arith.constant 1 : index
    %c0_6 = arith.constant 0 : index
    %c0_7 = arith.constant 0 : index
    %6 = vector.load %arg1[%c0_5, %c1, %c0_6, %c0_7] : memref<2x4x8x256xf32, #tpu.memory_space<vmem>>, vector<2x1x8x256xf32>
    %7 = vector.shape_cast %6 : vector<2x1x8x256xf32> to vector<2x8x256xf32>
    %8 = vector.shape_cast %7 : vector<2x8x256xf32> to vector<16x256xf32>
    %9 = arith.truncf %8 : vector<16x256xf32> to vector<16x256xbf16>
    %c256 = arith.constant 256 : index
    %c0_8 = arith.constant 0 : index
    %10 = vector.load %arg2[%c256, %c0_8] : memref<1024x128xbf16, #tpu.memory_space<vmem>>, vector<256x128xbf16>
    %cst_9 = arith.constant dense<0.000000e+00> : vector<16x128xf32>
    %11 = tpu.matmul %9, %10, %cst_9 {dimension_numbers = #tpu.dot_dimension_numbers<[1], [0], [0], [1], [0, 0, 1, 1], [], []>} : vector<16x256xbf16>, vector<256x128xbf16>, vector<16x128xf32> -> vector<16x128xf32>
    %12 = arith.addf %5, %11 : vector<16x128xf32>
    %c0_10 = arith.constant 0 : index
    %c2 = arith.constant 2 : index
    %c0_11 = arith.constant 0 : index
    %c0_12 = arith.constant 0 : index
    %13 = vector.load %arg1[%c0_10, %c2, %c0_11, %c0_12] : memref<2x4x8x256xf32, #tpu.memory_space<vmem>>, vector<2x1x8x256xf32>
    %14 = vector.shape_cast %13 : vector<2x1x8x256xf32> to vector<2x8x256xf32>
    %15 = vector.shape_cast %14 : vector<2x8x256xf32> to vector<16x256xf32>
    %16 = arith.truncf %15 : vector<16x256xf32> to vector<16x256xbf16>
    %c512 = arith.constant 512 : index
    %c0_13 = arith.constant 0 : index
    %17 = vector.load %arg2[%c512, %c0_13] : memref<1024x128xbf16, #tpu.memory_space<vmem>>, vector<256x128xbf16>
    %cst_14 = arith.constant dense<0.000000e+00> : vector<16x128xf32>
    %18 = tpu.matmul %16, %17, %cst_14 {dimension_numbers = #tpu.dot_dimension_numbers<[1], [0], [0], [1], [0, 0, 1, 1], [], []>} : vector<16x256xbf16>, vector<256x128xbf16>, vector<16x128xf32> -> vector<16x128xf32>
    %19 = arith.addf %12, %18 : vector<16x128xf32>
    %c0_15 = arith.constant 0 : index
    %c3 = arith.constant 3 : index
    %c0_16 = arith.constant 0 : index
    %c0_17 = arith.constant 0 : index
    %20 = vector.load %arg1[%c0_15, %c3, %c0_16, %c0_17] : memref<2x4x8x256xf32, #tpu.memory_space<vmem>>, vector<2x1x8x256xf32>
    %21 = vector.shape_cast %20 : vector<2x1x8x256xf32> to vector<2x8x256xf32>
    %22 = vector.shape_cast %21 : vector<2x8x256xf32> to vector<16x256xf32>
    %23 = arith.truncf %22 : vector<16x256xf32> to vector<16x256xbf16>
    %c768 = arith.constant 768 : index
    %c0_18 = arith.constant 0 : index
    %24 = vector.load %arg2[%c768, %c0_18] : memref<1024x128xbf16, #tpu.memory_space<vmem>>, vector<256x128xbf16>
    %cst_19 = arith.constant dense<0.000000e+00> : vector<16x128xf32>
    %25 = tpu.matmul %23, %24, %cst_19 {dimension_numbers = #tpu.dot_dimension_numbers<[1], [0], [0], [1], [0, 0, 1, 1], [], []>} : vector<16x256xbf16>, vector<256x128xbf16>, vector<16x128xf32> -> vector<16x128xf32>
    %26 = arith.addf %19, %25 : vector<16x128xf32>
    %c0_20 = arith.constant 0 : index
    %c0_21 = arith.constant 0 : index
    %27 = vector.load %arg3[%c0_20, %c0_21] : memref<1x128xf32, #tpu.memory_space<vmem>>, vector<1x128xf32>
    %28 = vector.broadcast %27 : vector<1x128xf32> to vector<16x128xf32>
    %29 = arith.addf %26, %28 : vector<16x128xf32>
    %cst_22 = arith.constant 0.000000e+00 : f32
    %30 = vector.broadcast %cst_22 : f32 to vector<16x128xf32>
    %31 = arith.maximumf %29, %30 : vector<16x128xf32>
    %32 = arith.truncf %31 : vector<16x128xf32> to vector<16x128xbf16>
    %c0_23 = arith.constant 0 : index
    %c0_24 = arith.constant 0 : index
    %33 = vector.load %arg4[%c0_23, %c0_24] : memref<128x128xbf16, #tpu.memory_space<vmem>>, vector<128x128xbf16>
    %cst_25 = arith.constant dense<0.000000e+00> : vector<16x128xf32>
    %34 = tpu.matmul %32, %33, %cst_25 {dimension_numbers = #tpu.dot_dimension_numbers<[1], [0], [0], [1], [0, 0, 1, 1], [], []>} : vector<16x128xbf16>, vector<128x128xbf16>, vector<16x128xf32> -> vector<16x128xf32>
    %c0_26 = arith.constant 0 : index
    %c0_27 = arith.constant 0 : index
    %35 = vector.load %arg5[%c0_26, %c0_27] : memref<1x128xf32, #tpu.memory_space<vmem>>, vector<1x128xf32>
    %36 = vector.broadcast %35 : vector<1x128xf32> to vector<16x128xf32>
    %37 = arith.addf %34, %36 : vector<16x128xf32>
    %cst_28 = arith.constant 0.000000e+00 : f32
    %38 = vector.broadcast %cst_28 : f32 to vector<16x128xf32>
    %39 = arith.maximumf %37, %38 : vector<16x128xf32>
    %40 = arith.truncf %39 : vector<16x128xf32> to vector<16x128xbf16>
    %c0_29 = arith.constant 0 : index
    %c0_30 = arith.constant 0 : index
    %41 = vector.load %arg6[%c0_29, %c0_30] : memref<128x128xbf16, #tpu.memory_space<vmem>>, vector<128x128xbf16>
    %cst_31 = arith.constant dense<0.000000e+00> : vector<16x128xf32>
    %42 = tpu.matmul %40, %41, %cst_31 {dimension_numbers = #tpu.dot_dimension_numbers<[1], [0], [0], [1], [0, 0, 1, 1], [], []>} : vector<16x128xbf16>, vector<128x128xbf16>, vector<16x128xf32> -> vector<16x128xf32>
    %43 = arith.addf %31, %42 : vector<16x128xf32>
    %c0_32 = arith.constant 0 : index
    %c0_33 = arith.constant 0 : index
    %44 = vector.load %arg7[%c0_32, %c0_33] : memref<1x128xf32, #tpu.memory_space<vmem>>, vector<1x128xf32>
    %45 = vector.broadcast %44 : vector<1x128xf32> to vector<16x128xf32>
    %46 = arith.addf %43, %45 : vector<16x128xf32>
    %47 = vector.extract_strided_slice %46 {offsets = [0, 0], sizes = [8, 128], strides = [1, 1]} : vector<16x128xf32> to vector<8x128xf32>
    %c0_34 = arith.constant 0 : index
    %c0_35 = arith.constant 0 : index
    %48 = vector.load %arg11[%c0_34, %c0_35] : memref<32x128xf32, #tpu.memory_space<vmem>>, vector<8x128xf32>
    tpu.vector_store %arg11[%c0_34, %c0_35], %47 {strides = array<i32>} : memref<32x128xf32, #tpu.memory_space<vmem>>, vector<8x128xf32>,
    %49 = vector.extract_strided_slice %46 {offsets = [8, 0], sizes = [8, 128], strides = [1, 1]} : vector<16x128xf32> to vector<8x128xf32>
    %c16 = arith.constant 16 : index
    %c0_36 = arith.constant 0 : index
    %50 = vector.load %arg11[%c16, %c0_36] : memref<32x128xf32, #tpu.memory_space<vmem>>, vector<8x128xf32>
    tpu.vector_store %arg11[%c16, %c0_36], %49 {strides = array<i32>} : memref<32x128xf32, #tpu.memory_space<vmem>>, vector<8x128xf32>,
    %c0_37 = arith.constant 0 : index
    %c0_38 = arith.constant 0 : index
    %51 = tpu.strided_load %arg11[%c0_37, %c0_38] {strides = array<i32: 2, 1>} : memref<32x128xf32, #tpu.memory_space<vmem>>, vector<4x128xf32>
    %c1_39 = arith.constant 1 : index
    %c0_40 = arith.constant 0 : index
    %52 = tpu.strided_load %arg11[%c1_39, %c0_40] {strides = array<i32: 2, 1>} : memref<32x128xf32, #tpu.memory_space<vmem>>, vector<4x128xf32>
    %cst_41 = arith.constant 0.000000e+00 : f32
    %53 = vector.broadcast %cst_41 : f32 to vector<1x128xf32>
    %54 = vector.extract_strided_slice %52 {offsets = [0, 0], sizes = [3, 128], strides = [1, 1]} : vector<4x128xf32> to vector<3x128xf32>
    %55 = tpu.concatenate %53, %54 in 0 : vector<1x128xf32>, vector<3x128xf32> -> vector<4x128xf32>
    %56 = arith.truncf %55 : vector<4x128xf32> to vector<4x128xbf16>
    %c0_42 = arith.constant 0 : index
    %c0_43 = arith.constant 0 : index
    %57 = vector.load %arg8[%c0_42, %c0_43] : memref<384x128xbf16, #tpu.memory_space<vmem>>, vector<128x128xbf16>
    %cst_44 = arith.constant dense<0.000000e+00> : vector<4x128xf32>
    %58 = tpu.matmul %56, %57, %cst_44 {dimension_numbers = #tpu.dot_dimension_numbers<[1], [0], [0], [1], [0, 0, 1, 1], [], []>} : vector<4x128xbf16>, vector<128x128xbf16>, vector<4x128xf32> -> vector<4x128xf32>
    %59 = arith.truncf %51 : vector<4x128xf32> to vector<4x128xbf16>
    %c128 = arith.constant 128 : index
    %c0_45 = arith.constant 0 : index
    %60 = vector.load %arg8[%c128, %c0_45] : memref<384x128xbf16, #tpu.memory_space<vmem>>, vector<128x128xbf16>
    %cst_46 = arith.constant dense<0.000000e+00> : vector<4x128xf32>
    %61 = tpu.matmul %59, %60, %cst_46 {dimension_numbers = #tpu.dot_dimension_numbers<[1], [0], [0], [1], [0, 0, 1, 1], [], []>} : vector<4x128xbf16>, vector<128x128xbf16>, vector<4x128xf32> -> vector<4x128xf32>
    %62 = arith.addf %58, %61 : vector<4x128xf32>
    %63 = arith.truncf %52 : vector<4x128xf32> to vector<4x128xbf16>
    %c256_47 = arith.constant 256 : index
    %c0_48 = arith.constant 0 : index
    %64 = vector.load %arg8[%c256_47, %c0_48] : memref<384x128xbf16, #tpu.memory_space<vmem>>, vector<128x128xbf16>
    %cst_49 = arith.constant dense<0.000000e+00> : vector<4x128xf32>
    %65 = tpu.matmul %63, %64, %cst_49 {dimension_numbers = #tpu.dot_dimension_numbers<[1], [0], [0], [1], [0, 0, 1, 1], [], []>} : vector<4x128xbf16>, vector<128x128xbf16>, vector<4x128xf32> -> vector<4x128xf32>
    %66 = arith.addf %62, %65 : vector<4x128xf32>
    %c16_50 = arith.constant 16 : index
    %c0_51 = arith.constant 0 : index
    %67 = tpu.strided_load %arg11[%c16_50, %c0_51] {strides = array<i32: 2, 1>} : memref<32x128xf32, #tpu.memory_space<vmem>>, vector<4x128xf32>
    %c17 = arith.constant 17 : index
    %c0_52 = arith.constant 0 : index
    %68 = tpu.strided_load %arg11[%c17, %c0_52] {strides = array<i32: 2, 1>} : memref<32x128xf32, #tpu.memory_space<vmem>>, vector<4x128xf32>
    %cst_53 = arith.constant 0.000000e+00 : f32
    %69 = vector.broadcast %cst_53 : f32 to vector<1x128xf32>
    %70 = vector.extract_strided_slice %68 {offsets = [0, 0], sizes = [3, 128], strides = [1, 1]} : vector<4x128xf32> to vector<3x128xf32>
    %71 = tpu.concatenate %69, %70 in 0 : vector<1x128xf32>, vector<3x128xf32> -> vector<4x128xf32>
    %72 = arith.truncf %71 : vector<4x128xf32> to vector<4x128xbf16>
    %c0_54 = arith.constant 0 : index
    %c0_55 = arith.constant 0 : index
    %73 = vector.load %arg8[%c0_54, %c0_55] : memref<384x128xbf16, #tpu.memory_space<vmem>>, vector<128x128xbf16>
    %cst_56 = arith.constant dense<0.000000e+00> : vector<4x128xf32>
    %74 = tpu.matmul %72, %73, %cst_56 {dimension_numbers = #tpu.dot_dimension_numbers<[1], [0], [0], [1], [0, 0, 1, 1], [], []>} : vector<4x128xbf16>, vector<128x128xbf16>, vector<4x128xf32> -> vector<4x128xf32>
    %75 = arith.truncf %67 : vector<4x128xf32> to vector<4x128xbf16>
    %c128_57 = arith.constant 128 : index
    %c0_58 = arith.constant 0 : index
    %76 = vector.load %arg8[%c128_57, %c0_58] : memref<384x128xbf16, #tpu.memory_space<vmem>>, vector<128x128xbf16>
    %cst_59 = arith.constant dense<0.000000e+00> : vector<4x128xf32>
    %77 = tpu.matmul %75, %76, %cst_59 {dimension_numbers = #tpu.dot_dimension_numbers<[1], [0], [0], [1], [0, 0, 1, 1], [], []>} : vector<4x128xbf16>, vector<128x128xbf16>, vector<4x128xf32> -> vector<4x128xf32>
    %78 = arith.addf %74, %77 : vector<4x128xf32>
    %79 = arith.truncf %68 : vector<4x128xf32> to vector<4x128xbf16>
    %c256_60 = arith.constant 256 : index
    %c0_61 = arith.constant 0 : index
    %80 = vector.load %arg8[%c256_60, %c0_61] : memref<384x128xbf16, #tpu.memory_space<vmem>>, vector<128x128xbf16>
    %cst_62 = arith.constant dense<0.000000e+00> : vector<4x128xf32>
    %81 = tpu.matmul %79, %80, %cst_62 {dimension_numbers = #tpu.dot_dimension_numbers<[1], [0], [0], [1], [0, 0, 1, 1], [], []>} : vector<4x128xbf16>, vector<128x128xbf16>, vector<4x128xf32> -> vector<4x128xf32>
    %82 = arith.addf %78, %81 : vector<4x128xf32>
    %83 = tpu.concatenate %66, %82 in 0 : vector<4x128xf32>, vector<4x128xf32> -> vector<8x128xf32>
    %c0_63 = arith.constant 0 : index
    %c0_64 = arith.constant 0 : index
    %84 = vector.load %arg9[%c0_63, %c0_64] : memref<1x128xf32, #tpu.memory_space<vmem>>, vector<1x128xf32>
    %85 = vector.broadcast %84 : vector<1x128xf32> to vector<8x128xf32>
    %86 = arith.addf %83, %85 : vector<8x128xf32>
    %c0_65 = arith.constant 0 : index
    %c0_66 = arith.constant 0 : index
    %87 = vector.load %arg10[%c0_65, %c0_66] : memref<8x128xf32, #tpu.memory_space<vmem>>, vector<8x128xf32>
    tpu.vector_store %arg10[%c0_65, %c0_66], %86 {strides = array<i32>} : memref<8x128xf32, #tpu.memory_space<vmem>>, vector<8x128xf32>,
    return
  }
  func.func @transform_0(%arg0: i32) -> (i32, i32, i32, i32) {
    %c0_i32 = arith.constant 0 : i32
    %c0_i32_0 = arith.constant 0 : i32
    %c0_i32_1 = arith.constant 0 : i32
    %c0_i32_2 = arith.constant 0 : i32
    return %arg0, %c0_i32, %c0_i32_0, %c0_i32_1 : i32, i32, i32, i32
  }
  func.func @transform_1(%arg0: i32) -> (i32, i32) {
    %c0_i32 = arith.constant 0 : i32
    %c0_i32_0 = arith.constant 0 : i32
    %c0_i32_1 = arith.constant 0 : i32
    return %c0_i32, %c0_i32_0 : i32, i32
  }
  func.func @transform_2(%arg0: i32) -> (i32, i32) {
    %c0_i32 = arith.constant 0 : i32
    %c0_i32_0 = arith.constant 0 : i32
    %c0_i32_1 = arith.constant 0 : i32
    return %c0_i32, %c0_i32_0 : i32, i32
  }
  func.func @transform_3(%arg0: i32) -> (i32, i32) {
    %c0_i32 = arith.constant 0 : i32
    %c0_i32_0 = arith.constant 0 : i32
    %c0_i32_1 = arith.constant 0 : i32
    return %c0_i32, %c0_i32_0 : i32, i32
  }
  func.func @transform_4(%arg0: i32) -> (i32, i32) {
    %c0_i32 = arith.constant 0 : i32
    %c0_i32_0 = arith.constant 0 : i32
    %c0_i32_1 = arith.constant 0 : i32
    return %c0_i32, %c0_i32_0 : i32, i32
  }
  func.func @transform_5(%arg0: i32) -> (i32, i32) {
    %c0_i32 = arith.constant 0 : i32
    %c0_i32_0 = arith.constant 0 : i32
    %c0_i32_1 = arith.constant 0 : i32
    return %c0_i32, %c0_i32_0 : i32, i32
  }
  func.func @transform_6(%arg0: i32) -> (i32, i32) {
    %c0_i32 = arith.constant 0 : i32
    %c0_i32_0 = arith.constant 0 : i32
    %c0_i32_1 = arith.constant 0 : i32
    return %c0_i32, %c0_i32_0 : i32, i32
  }
  func.func @transform_7(%arg0: i32) -> (i32, i32) {
    %c0_i32 = arith.constant 0 : i32
    %c0_i32_0 = arith.constant 0 : i32
    %c0_i32_1 = arith.constant 0 : i32
    return %c0_i32, %c0_i32_0 : i32, i32
  }
  func.func @transform_8(%arg0: i32) -> (i32, i32) {
    %c0_i32 = arith.constant 0 : i32
    %c0_i32_0 = arith.constant 0 : i32
    %c0_i32_1 = arith.constant 0 : i32
    return %c0_i32, %c0_i32_0 : i32, i32
  }
  func.func @transform_9(%arg0: i32) -> (i32, i32) {
    %c0_i32 = arith.constant 0 : i32
    %c0_i32_0 = arith.constant 0 : i32
    return %arg0, %c0_i32 : i32, i32
  }
}

</mosaic_0001>

<llo_original>
// kernel: tpu_custom_call.1
$region0: #{tpu_custom_call.1}
  #allocation0 [shape = 'u32[]', space=smem, size = 0x4, offset = 0x4, fixed_abs, tag = 'smem constant byte address 0x4 - core index']
  #allocation1 [shape = 'u32[144,128]{1,0:T(1,128)}', space=vmem, size = 0x12000, scoped, tag = 'internal scratch']
  #allocation2 [shape = 'f32[32,128]{1,0:T(8,128)}', space=vmem, size = 0x4000, scoped, tag = 'scratch operand']
  %s0 = inlined_call_operand.hbm [shape: f32[2,4,8,256], index: 0, kind: input, shape index: {}]
  %s1 = inlined_call_operand.hbm [shape: bf16[1024,128], index: 1, kind: input, shape index: {}]
  %s2 = inlined_call_operand.vmem [shape: f32[1,128], index: 2, kind: input, shape index: {}]
  %s3 = inlined_call_operand.hbm [shape: bf16[128,128], index: 3, kind: input, shape index: {}]
  %s4 = inlined_call_operand.vmem [shape: f32[1,128], index: 4, kind: input, shape index: {}]
  %s5 = inlined_call_operand.hbm [shape: bf16[128,128], index: 5, kind: input, shape index: {}]
  %s6 = inlined_call_operand.vmem [shape: f32[1,128], index: 6, kind: input, shape index: {}]
  %s7 = inlined_call_operand.hbm [shape: bf16[384,128], index: 7, kind: input, shape index: {}]
  %s8 = inlined_call_operand.vmem [shape: f32[1,128], index: 8, kind: input, shape index: {}]
  %s9 = inlined_call_operand.hbm [shape: f32[8,128], index: 9, kind: output, shape index: {}]
  %s10 = sld [smem:[#allocation0]]
  $region66: #{tpu_custom_call.1} parent=0
    _
  %s12 = ssub.s32 1, %s10
  %s13 = scalar_select 0, %s12, %s10
  $region1: #{tpu_custom_call.1} parent=0
    #allocation3 [shape = 'u8[65536]{0}', space=vmem, size = 0x10000, scoped, tag = 'input window, operand 0, single buffered']
    #allocation4 [shape = 's32[1]{0}', space=sflag, size = 0x4, scoped, tag = 'scoped memory for tpu_custom_call.1']
    #allocation5 [shape = 's32[1]{0}', space=sflag, size = 0x4, scoped, tag = 'scoped memory for tpu_custom_call.1']
    #allocation6 [shape = 'u8[262144]{0}', space=vmem, size = 0x40000, scoped, tag = 'input window, operand 1, single buffered']
    #allocation7 [shape = 's32[1]{0}', space=sflag, size = 0x4, scoped, tag = 'scoped memory for tpu_custom_call.1']
    #allocation8 [shape = 'u8[32768]{0}', space=vmem, size = 0x8000, scoped, tag = 'input window, operand 3, single buffered']
    #allocation9 [shape = 'u8[32768]{0}', space=vmem, size = 0x8000, scoped, tag = 'input window, operand 5, single buffered']
    #allocation10 [shape = 's32[1]{0}', space=sflag, size = 0x4, scoped, tag = 'scoped memory for tpu_custom_call.1']
    #allocation11 [shape = 'u8[98304]{0}', space=vmem, size = 0x18000, scoped, tag = 'input window, operand 7, single buffered']
    #allocation12 [shape = 'u8[4096]{0}', space=vmem, size = 0x1000, scoped, tag = 'output window, operand 0, single buffered']
    %14 = vsyncpa [#allocation4], 0
    %15 = vsyncpa [#allocation7], 0
    %16 = vsyncpa [#allocation10], 0
    %17 = vsyncpa [#allocation5], 0
    // Predicated region
    $region2: #{tpu_custom_call.1} parent=1 // pred_check
      _
    $region3: #{tpu_custom_call.1} parent=1 // pred_check_branch
      %19 = sbr.rel (0) target = $region5
    $region4: #{tpu_custom_call.1} parent=1 // pred_region
      %s21 = ssub.s32 2048, 2048
      %22 = vsyncadd [#allocation4], %s21
      %s23 = sshll.u32 [#allocation3], 4
      %s24 = int_to_ptr.vmem [resolvable:$true] %s23
      %29 = dma.hbm_to_vmem [thread:$0]  %s0, 2048, %s24, [#allocation4], 256, 256, 16
    $region5: #{tpu_custom_call.1} parent=1 // pred_fallthru
      _
    // Predicated region
    $region6: #{tpu_custom_call.1} parent=1 // pred_check
      _
    $region7: #{tpu_custom_call.1} parent=1 // pred_check_branch
      %31 = sbr.rel (0) target = $region9
    $region8: #{tpu_custom_call.1} parent=1 // pred_region
      %s33 = ssub.s32 8192, 8192
      %34 = vsyncadd [#allocation7], %s33
      %s35 = sshll.u32 [#allocation6], 4
      %s36 = int_to_ptr.vmem [resolvable:$true] %s35
      %41 = dma.hbm_to_vmem [thread:$0]  %s1, 8192, %s36, [#allocation7], 64, 64, 4
    $region9: #{tpu_custom_call.1} parent=1 // pred_fallthru
      _
    // Predicated region
    $region10: #{tpu_custom_call.1} parent=1 // pred_check
      _
    $region11: #{tpu_custom_call.1} parent=1 // pred_check_branch
      %43 = sbr.rel (0) target = $region13
    $region12: #{tpu_custom_call.1} parent=1 // pred_region
      _
    $region13: #{tpu_custom_call.1} parent=1 // pred_fallthru
      _
    // Predicated region
    $region14: #{tpu_custom_call.1} parent=1 // pred_check
      _
    $region15: #{tpu_custom_call.1} parent=1 // pred_check_branch
      %45 = sbr.rel (0) target = $region17
    $region16: #{tpu_custom_call.1} parent=1 // pred_region
      %s47 = ssub.s32 1024, 1024
      %48 = vsyncadd [#allocation7], %s47
      %s49 = sshll.u32 [#allocation8], 4
      %s50 = int_to_ptr.vmem [resolvable:$true] %s49
      %55 = dma.hbm_to_vmem [thread:$0]  %s3, 1024, %s50, [#allocation7], 64, 64, 4
    $region17: #{tpu_custom_call.1} parent=1 // pred_fallthru
      _
    // Predicated region
    $region18: #{tpu_custom_call.1} parent=1 // pred_check
      _
    $region19: #{tpu_custom_call.1} parent=1 // pred_check_branch
      %57 = sbr.rel (0) target = $region21
    $region20: #{tpu_custom_call.1} parent=1 // pred_region
      _
    $region21: #{tpu_custom_call.1} parent=1 // pred_fallthru
      _
    // Predicated region
    $region22: #{tpu_custom_call.1} parent=1 // pred_check
      _
    $region23: #{tpu_custom_call.1} parent=1 // pred_check_branch
      %59 = sbr.rel (0) target = $region25
    $region24: #{tpu_custom_call.1} parent=1 // pred_region
      %s61 = ssub.s32 1024, 1024
      %62 = vsyncadd [#allocation10], %s61
      %s63 = sshll.u32 [#allocation9], 4
      %s64 = int_to_ptr.vmem [resolvable:$true] %s63
      %69 = dma.hbm_to_vmem [thread:$0]  %s5, 1024, %s64, [#allocation10], 64, 64, 4
    $region25: #{tpu_custom_call.1} parent=1 // pred_fallthru
      _
    // Predicated region
    $region26: #{tpu_custom_call.1} parent=1 // pred_check
      _
    $region27: #{tpu_custom_call.1} parent=1 // pred_check_branch
      %71 = sbr.rel (0) target = $region29
    $region28: #{tpu_custom_call.1} parent=1 // pred_region
      _
    $region29: #{tpu_custom_call.1} parent=1 // pred_fallthru
      _
    // Predicated region
    $region30: #{tpu_custom_call.1} parent=1 // pred_check
      _
    $region31: #{tpu_custom_call.1} parent=1 // pred_check_branch
      %73 = sbr.rel (0) target = $region33
    $region32: #{tpu_custom_call.1} parent=1 // pred_region
      %s75 = ssub.s32 3072, 3072
      %76 = vsyncadd [#allocation10], %s75
      %s77 = sshll.u32 [#allocation11], 4
      %s78 = int_to_ptr.vmem [resolvable:$true] %s77
      %83 = dma.hbm_to_vmem [thread:$0]  %s7, 3072, %s78, [#allocation10], 64, 64, 4
    $region33: #{tpu_custom_call.1} parent=1 // pred_fallthru
      _
    // Predicated region
    $region34: #{tpu_custom_call.1} parent=1 // pred_check
      _
    $region35: #{tpu_custom_call.1} parent=1 // pred_check_branch
      %85 = sbr.rel (0) target = $region37
    $region36: #{tpu_custom_call.1} parent=1 // pred_region
      _
    $region37: #{tpu_custom_call.1} parent=1 // pred_fallthru
      _
    // Predicated region
    $region38: #{tpu_custom_call.1} parent=1 // pred_check
      _
    $region39: #{tpu_custom_call.1} parent=1 // pred_check_branch
      %87 = sbr.rel (0) target = $region41
    $region40: #{tpu_custom_call.1} parent=1 // pred_region
      %88 = dma.done [#allocation4], 2048
    $region41: #{tpu_custom_call.1} parent=1 // pred_fallthru
      _
    // Predicated region
    $region42: #{tpu_custom_call.1} parent=1 // pred_check
      _
    $region43: #{tpu_custom_call.1} parent=1 // pred_check_branch
      %90 = sbr.rel (0) target = $region45
    $region44: #{tpu_custom_call.1} parent=1 // pred_region
      %91 = dma.done [#allocation7], 8192
    $region45: #{tpu_custom_call.1} parent=1 // pred_fallthru
      _
    // Predicated region
    $region46: #{tpu_custom_call.1} parent=1 // pred_check
      _
    $region47: #{tpu_custom_call.1} parent=1 // pred_check_branch
      %93 = sbr.rel (0) target = $region49
    $region48: #{tpu_custom_call.1} parent=1 // pred_region
      %94 = dma.done [#allocation7], 1024
    $region49: #{tpu_custom_call.1} parent=1 // pred_fallthru
      _
    // Predicated region
    $region50: #{tpu_custom_call.1} parent=1 // pred_check
      _
    $region51: #{tpu_custom_call.1} parent=1 // pred_check_branch
      %96 = sbr.rel (0) target = $region53
    $region52: #{tpu_custom_call.1} parent=1 // pred_region
      %97 = dma.done [#allocation10], 1024
    $region53: #{tpu_custom_call.1} parent=1 // pred_fallthru
      _
    // Predicated region
    $region54: #{tpu_custom_call.1} parent=1 // pred_check
      _
    $region55: #{tpu_custom_call.1} parent=1 // pred_check_branch
      %99 = sbr.rel (0) target = $region57
    $region56: #{tpu_custom_call.1} parent=1 // pred_region
      %100 = dma.done [#allocation10], 3072
    $region57: #{tpu_custom_call.1} parent=1 // pred_fallthru
      _
    %v102 = vld [vmem:[#allocation3] sm:$0xff]
    %v103 = vld [vmem:[#allocation3 + $0x8] sm:$0xff]
    %v104 = vld [vmem:[#allocation3 + $0x40] sm:$0xff]
    %v105 = vld [vmem:[#allocation3 + $0x48] sm:$0xff]
    %v106 = vpack.c.bf16 %v104, %v102
    %v107 = vpack.c.bf16 %v105, %v103
    %v108 = vld [vmem:[#allocation6] sm:$0xf]
    %v109 = vld [vmem:[#allocation6 + $0x4] sm:$0xf]
    %v110 = vld [vmem:[#allocation6 + $0x8] sm:$0xf]
    %v111 = vld [vmem:[#allocation6 + $0xc] sm:$0xf]
    %v112 = vld [vmem:[#allocation6 + $0x10] sm:$0xf]
    %v113 = vld [vmem:[#allocation6 + $0x14] sm:$0xf]
    %v114 = vld [vmem:[#allocation6 + $0x18] sm:$0xf]
    %v115 = vld [vmem:[#allocation6 + $0x1c] sm:$0xf]
    %v116 = vld [vmem:[#allocation6 + $0x20] sm:$0xf]
    %v117 = vld [vmem:[#allocation6 + $0x24] sm:$0xf]
    %v118 = vld [vmem:[#allocation6 + $0x28] sm:$0xf]
    %v119 = vld [vmem:[#allocation6 + $0x2c] sm:$0xf]
    %v120 = vld [vmem:[#allocation6 + $0x30] sm:$0xf]
    %v121 = vld [vmem:[#allocation6 + $0x34] sm:$0xf]
    %v122 = vld [vmem:[#allocation6 + $0x38] sm:$0xf]
    %v123 = vld [vmem:[#allocation6 + $0x3c] sm:$0xf]
    %v124 = vld [vmem:[#allocation6 + $0x40] sm:$0xf]
    %v125 = vld [vmem:[#allocation6 + $0x44] sm:$0xf]
    %v126 = vld [vmem:[#allocation6 + $0x48] sm:$0xf]
    %v127 = vld [vmem:[#allocation6 + $0x4c] sm:$0xf]
    %v128 = vld [vmem:[#allocation6 + $0x50] sm:$0xf]
    %v129 = vld [vmem:[#allocation6 + $0x54] sm:$0xf]
    %v130 = vld [vmem:[#allocation6 + $0x58] sm:$0xf]
    %v131 = vld [vmem:[#allocation6 + $0x5c] sm:$0xf]
    %v132 = vld [vmem:[#allocation6 + $0x60] sm:$0xf]
    %v133 = vld [vmem:[#allocation6 + $0x64] sm:$0xf]
    %v134 = vld [vmem:[#allocation6 + $0x68] sm:$0xf]
    %v135 = vld [vmem:[#allocation6 + $0x6c] sm:$0xf]
    %v136 = vld [vmem:[#allocation6 + $0x70] sm:$0xf]
    %v137 = vld [vmem:[#allocation6 + $0x74] sm:$0xf]
    %v138 = vld [vmem:[#allocation6 + $0x78] sm:$0xf]
    %v139 = vld [vmem:[#allocation6 + $0x7c] sm:$0xf]
    %s140 = scalar_lea.vmem [#allocation3], 16
    %v141 = vld [vmem:[%s140] sm:$0xff]
    %v142 = vld [vmem:[%s140 + $0x8] sm:$0xff]
    %v143 = vld [vmem:[%s140 + $0x40] sm:$0xff]
    %v144 = vld [vmem:[%s140 + $0x48] sm:$0xff]
    %v145 = vpack.c.bf16 %v143, %v141
    %v146 = vpack.c.bf16 %v144, %v142
    %v147 = vld [vmem:[#allocation6 + $0x80] sm:$0xf]
    %v148 = vld [vmem:[#allocation6 + $0x84] sm:$0xf]
    %v149 = vld [vmem:[#allocation6 + $0x88] sm:$0xf]
    %v150 = vld [vmem:[#allocation6 + $0x8c] sm:$0xf]
    %v151 = vld [vmem:[#allocation6 + $0x90] sm:$0xf]
    %v152 = vld [vmem:[#allocation6 + $0x94] sm:$0xf]
    %v153 = vld [vmem:[#allocation6 + $0x98] sm:$0xf]
    %v154 = vld [vmem:[#allocation6 + $0x9c] sm:$0xf]
    %v155 = vld [vmem:[#allocation6 + $0xa0] sm:$0xf]
    %v156 = vld [vmem:[#allocation6 + $0xa4] sm:$0xf]
    %v157 = vld [vmem:[#allocation6 + $0xa8] sm:$0xf]
    %v158 = vld [vmem:[#allocation6 + $0xac] sm:$0xf]
    %v159 = vld [vmem:[#allocation6 + $0xb0] sm:$0xf]
    %v160 = vld [vmem:[#allocation6 + $0xb4] sm:$0xf]
    %v161 = vld [vmem:[#allocation6 + $0xb8] sm:$0xf]
    %v162 = vld [vmem:[#allocation6 + $0xbc] sm:$0xf]
    %v163 = vld [vmem:[#allocation6 + $0xc0] sm:$0xf]
    %v164 = vld [vmem:[#allocation6 + $0xc4] sm:$0xf]
    %v165 = vld [vmem:[#allocation6 + $0xc8] sm:$0xf]
    %v166 = vld [vmem:[#allocation6 + $0xcc] sm:$0xf]
    %v167 = vld [vmem:[#allocation6 + $0xd0] sm:$0xf]
    %v168 = vld [vmem:[#allocation6 + $0xd4] sm:$0xf]
    %v169 = vld [vmem:[#allocation6 + $0xd8] sm:$0xf]
    %v170 = vld [vmem:[#allocation6 + $0xdc] sm:$0xf]
    %v171 = vld [vmem:[#allocation6 + $0xe0] sm:$0xf]
    %v172 = vld [vmem:[#allocation6 + $0xe4] sm:$0xf]
    %v173 = vld [vmem:[#allocation6 + $0xe8] sm:$0xf]
    %v174 = vld [vmem:[#allocation6 + $0xec] sm:$0xf]
    %v175 = vld [vmem:[#allocation6 + $0xf0] sm:$0xf]
    %v176 = vld [vmem:[#allocation6 + $0xf4] sm:$0xf]
    %v177 = vld [vmem:[#allocation6 + $0xf8] sm:$0xf]
    %v178 = vld [vmem:[#allocation6 + $0xfc] sm:$0xf]
    %v211 = vunpack.c.l.b16 %v147
    %v212 = vunpack.c.l.b16 %v148
    %v213 = vunpack.c.l.b16 %v149
    %v214 = vunpack.c.l.b16 %v150
    %v215 = vunpack.c.l.b16 %v151
    %v216 = vunpack.c.l.b16 %v152
    %v217 = vunpack.c.l.b16 %v153
    %v218 = vunpack.c.l.b16 %v154
    %v219 = vunpack.c.l.b16 %v155
    %v220 = vunpack.c.l.b16 %v156
    %v221 = vunpack.c.l.b16 %v157
    %v222 = vunpack.c.l.b16 %v158
    %v223 = vunpack.c.l.b16 %v159
    %v224 = vunpack.c.l.b16 %v160
    %v225 = vunpack.c.l.b16 %v161
    %v226 = vunpack.c.l.b16 %v162
    %v227 = vunpack.c.l.b16 %v163
    %v228 = vunpack.c.l.b16 %v164
    %v229 = vunpack.c.l.b16 %v165
    %v230 = vunpack.c.l.b16 %v166
    %v231 = vunpack.c.l.b16 %v167
    %v232 = vunpack.c.l.b16 %v168
    %v233 = vunpack.c.l.b16 %v169
    %v234 = vunpack.c.l.b16 %v170
    %v235 = vunpack.c.l.b16 %v171
    %v236 = vunpack.c.l.b16 %v172
    %v237 = vunpack.c.l.b16 %v173
    %v238 = vunpack.c.l.b16 %v174
    %v239 = vunpack.c.l.b16 %v175
    %v240 = vunpack.c.l.b16 %v176
    %v241 = vunpack.c.l.b16 %v177
    %v242 = vunpack.c.l.b16 %v178
    %v243 = vpack.c.b16 %v212, %v211
    %v244 = vpack.c.b16 %v214, %v213
    %v245 = vpack.c.b16 %v216, %v215
    %v246 = vpack.c.b16 %v218, %v217
    %v247 = vpack.c.b16 %v220, %v219
    %v248 = vpack.c.b16 %v222, %v221
    %v249 = vpack.c.b16 %v224, %v223
    %v250 = vpack.c.b16 %v226, %v225
    %v251 = vpack.c.b16 %v228, %v227
    %v252 = vpack.c.b16 %v230, %v229
    %v253 = vpack.c.b16 %v232, %v231
    %v254 = vpack.c.b16 %v234, %v233
    %v255 = vpack.c.b16 %v236, %v235
    %v256 = vpack.c.b16 %v238, %v237
    %v257 = vpack.c.b16 %v240, %v239
    %v258 = vpack.c.b16 %v242, %v241
    %275 = vmatprep.subr.bf16.mxu0 0
    %276 = vmatpush1.bf16.msra.mxu0 %v243
    %277 = vmatprep.subr.bf16.mxu0 0
    %278 = vmatpush1.bf16.msra.mxu0 %v244
    %279 = vmatprep.subr.bf16.mxu0 0
    %280 = vmatpush1.bf16.msra.mxu0 %v245
    %281 = vmatprep.subr.bf16.mxu0 0
    %282 = vmatpush1.bf16.msra.mxu0 %v246
    %283 = vmatprep.subr.bf16.mxu0 0
    %284 = vmatpush1.bf16.msra.mxu0 %v247
    %285 = vmatprep.subr.bf16.mxu0 0
    %286 = vmatpush1.bf16.msra.mxu0 %v248
    %287 = vmatprep.subr.bf16.mxu0 0
    %288 = vmatpush1.bf16.msra.mxu0 %v249
    %289 = vmatprep.subr.bf16.mxu0 0
    %290 = vmatpush1.bf16.msra.mxu0 %v250
    %291 = vmatprep.subr.bf16.mxu0 0
    %292 = vmatpush1.bf16.msra.mxu0 %v251
    %293 = vmatprep.subr.bf16.mxu0 0
    %294 = vmatpush1.bf16.msra.mxu0 %v252
    %295 = vmatprep.subr.bf16.mxu0 0
    %296 = vmatpush1.bf16.msra.mxu0 %v253
    %297 = vmatprep.subr.bf16.mxu0 0
    %298 = vmatpush1.bf16.msra.mxu0 %v254
    %299 = vmatprep.subr.bf16.mxu0 0
    %300 = vmatpush1.bf16.msra.mxu0 %v255
    %301 = vmatprep.subr.bf16.mxu0 0
    %302 = vmatpush1.bf16.msra.mxu0 %v256
    %303 = vmatprep.subr.bf16.mxu0 0
    %304 = vmatpush1.bf16.msra.mxu0 %v257
    %305 = vmatprep.subr.bf16.mxu0 0
    %306 = vmatpush1.bf16.msra.mxu0 %v258
    %307 = vmatprep.mubr.bf16.mxu0 %v146
    %308 = vmatmul.mubr.bf16.gmra.mrb[0].mxu0 %v145
    %v309 = vpop.f32.mrb[0].mxu0
    %v310 = vadd.f32 0.0, %v309
    %v311 = vpop.f32.mrb[0].mxu0
    %v312 = vpop.f32.mrb[0].mxu0
    %v313 = vadd.f32 0.0, %v312
    %v314 = vpop.f32.mrb[0].mxu0
    %315 = vdwg.mxu0
    %v348 = vunpack.c.l.b16 %v108
    %v349 = vunpack.c.l.b16 %v109
    %v350 = vunpack.c.l.b16 %v110
    %v351 = vunpack.c.l.b16 %v111
    %v352 = vunpack.c.l.b16 %v112
    %v353 = vunpack.c.l.b16 %v113
    %v354 = vunpack.c.l.b16 %v114
    %v355 = vunpack.c.l.b16 %v115
    %v356 = vunpack.c.l.b16 %v116
    %v357 = vunpack.c.l.b16 %v117
    %v358 = vunpack.c.l.b16 %v118
    %v359 = vunpack.c.l.b16 %v119
    %v360 = vunpack.c.l.b16 %v120
    %v361 = vunpack.c.l.b16 %v121
    %v362 = vunpack.c.l.b16 %v122
    %v363 = vunpack.c.l.b16 %v123
    %v364 = vunpack.c.l.b16 %v124
    %v365 = vunpack.c.l.b16 %v125
    %v366 = vunpack.c.l.b16 %v126
    %v367 = vunpack.c.l.b16 %v127
    %v368 = vunpack.c.l.b16 %v128
    %v369 = vunpack.c.l.b16 %v129
    %v370 = vunpack.c.l.b16 %v130
    %v371 = vunpack.c.l.b16 %v131
    %v372 = vunpack.c.l.b16 %v132
    %v373 = vunpack.c.l.b16 %v133
    %v374 = vunpack.c.l.b16 %v134
    %v375 = vunpack.c.l.b16 %v135
    %v376 = vunpack.c.l.b16 %v136
    %v377 = vunpack.c.l.b16 %v137
    %v378 = vunpack.c.l.b16 %v138
    %v379 = vunpack.c.l.b16 %v139
    %v380 = vpack.c.b16 %v349, %v348
    %v381 = vpack.c.b16 %v351, %v350
    %v382 = vpack.c.b16 %v353, %v352
    %v383 = vpack.c.b16 %v355, %v354
    %v384 = vpack.c.b16 %v357, %v356
    %v385 = vpack.c.b16 %v359, %v358
    %v386 = vpack.c.b16 %v361, %v360
    %v387 = vpack.c.b16 %v363, %v362
    %v388 = vpack.c.b16 %v365, %v364
    %v389 = vpack.c.b16 %v367, %v366
    %v390 = vpack.c.b16 %v369, %v368
    %v391 = vpack.c.b16 %v371, %v370
    %v392 = vpack.c.b16 %v373, %v372
    %v393 = vpack.c.b16 %v375, %v374
    %v394 = vpack.c.b16 %v377, %v376
    %v395 = vpack.c.b16 %v379, %v378
    %412 = vmatprep.subr.bf16.mxu0 0
    %413 = vmatpush1.bf16.msra.mxu0 %v380
    %414 = vmatprep.subr.bf16.mxu0 0
    %415 = vmatpush1.bf16.msra.mxu0 %v381
    %416 = vmatprep.subr.bf16.mxu0 0
    %417 = vmatpush1.bf16.msra.mxu0 %v382
    %418 = vmatprep.subr.bf16.mxu0 0
    %419 = vmatpush1.bf16.msra.mxu0 %v383
    %420 = vmatprep.subr.bf16.mxu0 0
    %421 = vmatpush1.bf16.msra.mxu0 %v384
    %422 = vmatprep.subr.bf16.mxu0 0
    %423 = vmatpush1.bf16.msra.mxu0 %v385
    %424 = vmatprep.subr.bf16.mxu0 0
    %425 = vmatpush1.bf16.msra.mxu0 %v386
    %426 = vmatprep.subr.bf16.mxu0 0
    %427 = vmatpush1.bf16.msra.mxu0 %v387
    %428 = vmatprep.subr.bf16.mxu0 0
    %429 = vmatpush1.bf16.msra.mxu0 %v388
    %430 = vmatprep.subr.bf16.mxu0 0
    %431 = vmatpush1.bf16.msra.mxu0 %v389
    %432 = vmatprep.subr.bf16.mxu0 0
    %433 = vmatpush1.bf16.msra.mxu0 %v390
    %434 = vmatprep.subr.bf16.mxu0 0
    %435 = vmatpush1.bf16.msra.mxu0 %v391
    %436 = vmatprep.subr.bf16.mxu0 0
    %437 = vmatpush1.bf16.msra.mxu0 %v392
    %438 = vmatprep.subr.bf16.mxu0 0
    %439 = vmatpush1.bf16.msra.mxu0 %v393
    %440 = vmatprep.subr.bf16.mxu0 0
    %441 = vmatpush1.bf16.msra.mxu0 %v394
    %442 = vmatprep.subr.bf16.mxu0 0
    %443 = vmatpush1.bf16.msra.mxu0 %v395
    %444 = vmatprep.mubr.bf16.mxu0 %v107
    %445 = vmatmul.mubr.bf16.gmra.mrb[0].mxu0 %v106
    %v446 = vpop.f32.mrb[0].mxu0
    %v447 = vadd.f32 %v310, %v446
    %v448 = vpop.f32.mrb[0].mxu0
    %v449 = vpop.f32.mrb[0].mxu0
    %v450 = vadd.f32 %v313, %v449
    %v451 = vpop.f32.mrb[0].mxu0
    %452 = vdwg.mxu0
    %s453 = scalar_lea.vmem [#allocation3], 32
    %v454 = vld [vmem:[%s453] sm:$0xff]
    %v455 = vld [vmem:[%s453 + $0x8] sm:$0xff]
    %v456 = vld [vmem:[%s453 + $0x40] sm:$0xff]
    %v457 = vld [vmem:[%s453 + $0x48] sm:$0xff]
    %v458 = vpack.c.bf16 %v456, %v454
    %v459 = vpack.c.bf16 %v457, %v455
    %v460 = vld [vmem:[#allocation6 + $0x100] sm:$0xf]
    %v461 = vld [vmem:[#allocation6 + $0x104] sm:$0xf]
    %v462 = vld [vmem:[#allocation6 + $0x108] sm:$0xf]
    %v463 = vld [vmem:[#allocation6 + $0x10c] sm:$0xf]
    %v464 = vld [vmem:[#allocation6 + $0x110] sm:$0xf]
    %v465 = vld [vmem:[#allocation6 + $0x114] sm:$0xf]
    %v466 = vld [vmem:[#allocation6 + $0x118] sm:$0xf]
    %v467 = vld [vmem:[#allocation6 + $0x11c] sm:$0xf]
    %v468 = vld [vmem:[#allocation6 + $0x120] sm:$0xf]
    %v469 = vld [vmem:[#allocation6 + $0x124] sm:$0xf]
    %v470 = vld [vmem:[#allocation6 + $0x128] sm:$0xf]
    %v471 = vld [vmem:[#allocation6 + $0x12c] sm:$0xf]
    %v472 = vld [vmem:[#allocation6 + $0x130] sm:$0xf]
    %v473 = vld [vmem:[#allocation6 + $0x134] sm:$0xf]
    %v474 = vld [vmem:[#allocation6 + $0x138] sm:$0xf]
    %v475 = vld [vmem:[#allocation6 + $0x13c] sm:$0xf]
    %v476 = vld [vmem:[#allocation6 + $0x140] sm:$0xf]
    %v477 = vld [vmem:[#allocation6 + $0x144] sm:$0xf]
    %v478 = vld [vmem:[#allocation6 + $0x148] sm:$0xf]
    %v479 = vld [vmem:[#allocation6 + $0x14c] sm:$0xf]
    %v480 = vld [vmem:[#allocation6 + $0x150] sm:$0xf]
    %v481 = vld [vmem:[#allocation6 + $0x154] sm:$0xf]
    %v482 = vld [vmem:[#allocation6 + $0x158] sm:$0xf]
    %v483 = vld [vmem:[#allocation6 + $0x15c] sm:$0xf]
    %v484 = vld [vmem:[#allocation6 + $0x160] sm:$0xf]
    %v485 = vld [vmem:[#allocation6 + $0x164] sm:$0xf]
    %v486 = vld [vmem:[#allocation6 + $0x168] sm:$0xf]
    %v487 = vld [vmem:[#allocation6 + $0x16c] sm:$0xf]
    %v488 = vld [vmem:[#allocation6 + $0x170] sm:$0xf]
    %v489 = vld [vmem:[#allocation6 + $0x174] sm:$0xf]
    %v490 = vld [vmem:[#allocation6 + $0x178] sm:$0xf]
    %v491 = vld [vmem:[#allocation6 + $0x17c] sm:$0xf]
    %v524 = vunpack.c.l.b16 %v460
    %v525 = vunpack.c.l.b16 %v461
    %v526 = vunpack.c.l.b16 %v462
    %v527 = vunpack.c.l.b16 %v463
    %v528 = vunpack.c.l.b16 %v464
    %v529 = vunpack.c.l.b16 %v465
    %v530 = vunpack.c.l.b16 %v466
    %v531 = vunpack.c.l.b16 %v467
    %v532 = vunpack.c.l.b16 %v468
    %v533 = vunpack.c.l.b16 %v469
    %v534 = vunpack.c.l.b16 %v470
    %v535 = vunpack.c.l.b16 %v471
    %v536 = vunpack.c.l.b16 %v472
    %v537 = vunpack.c.l.b16 %v473
    %v538 = vunpack.c.l.b16 %v474
    %v539 = vunpack.c.l.b16 %v475
    %v540 = vunpack.c.l.b16 %v476
    %v541 = vunpack.c.l.b16 %v477
    %v542 = vunpack.c.l.b16 %v478
    %v543 = vunpack.c.l.b16 %v479
    %v544 = vunpack.c.l.b16 %v480
    %v545 = vunpack.c.l.b16 %v481
    %v546 = vunpack.c.l.b16 %v482
    %v547 = vunpack.c.l.b16 %v483
    %v548 = vunpack.c.l.b16 %v484
    %v549 = vunpack.c.l.b16 %v485
    %v550 = vunpack.c.l.b16 %v486
    %v551 = vunpack.c.l.b16 %v487
    %v552 = vunpack.c.l.b16 %v488
    %v553 = vunpack.c.l.b16 %v489
    %v554 = vunpack.c.l.b16 %v490
    %v555 = vunpack.c.l.b16 %v491
    %v556 = vpack.c.b16 %v525, %v524
    %v557 = vpack.c.b16 %v527, %v526
    %v558 = vpack.c.b16 %v529, %v528
    %v559 = vpack.c.b16 %v531, %v530
    %v560 = vpack.c.b16 %v533, %v532
    %v561 = vpack.c.b16 %v535, %v534
    %v562 = vpack.c.b16 %v537, %v536
    %v563 = vpack.c.b16 %v539, %v538
    %v564 = vpack.c.b16 %v541, %v540
    %v565 = vpack.c.b16 %v543, %v542
    %v566 = vpack.c.b16 %v545, %v544
    %v567 = vpack.c.b16 %v547, %v546
    %v568 = vpack.c.b16 %v549, %v548
    %v569 = vpack.c.b16 %v551, %v550
    %v570 = vpack.c.b16 %v553, %v552
    %v571 = vpack.c.b16 %v555, %v554
    %588 = vmatprep.subr.bf16.mxu0 0
    %589 = vmatpush1.bf16.msra.mxu0 %v556
    %590 = vmatprep.subr.bf16.mxu0 0
    %591 = vmatpush1.bf16.msra.mxu0 %v557
    %592 = vmatprep.subr.bf16.mxu0 0
    %593 = vmatpush1.bf16.msra.mxu0 %v558
    %594 = vmatprep.subr.bf16.mxu0 0
    %595 = vmatpush1.bf16.msra.mxu0 %v559
    %596 = vmatprep.subr.bf16.mxu0 0
    %597 = vmatpush1.bf16.msra.mxu0 %v560
    %598 = vmatprep.subr.bf16.mxu0 0
    %599 = vmatpush1.bf16.msra.mxu0 %v561
    %600 = vmatprep.subr.bf16.mxu0 0
    %601 = vmatpush1.bf16.msra.mxu0 %v562
    %602 = vmatprep.subr.bf16.mxu0 0
    %603 = vmatpush1.bf16.msra.mxu0 %v563
    %604 = vmatprep.subr.bf16.mxu0 0
    %605 = vmatpush1.bf16.msra.mxu0 %v564
    %606 = vmatprep.subr.bf16.mxu0 0
    %607 = vmatpush1.bf16.msra.mxu0 %v565
    %608 = vmatprep.subr.bf16.mxu0 0
    %609 = vmatpush1.bf16.msra.mxu0 %v566
    %610 = vmatprep.subr.bf16.mxu0 0
    %611 = vmatpush1.bf16.msra.mxu0 %v567
    %612 = vmatprep.subr.bf16.mxu0 0
    %613 = vmatpush1.bf16.msra.mxu0 %v568
    %614 = vmatprep.subr.bf16.mxu0 0
    %615 = vmatpush1.bf16.msra.mxu0 %v569
    %616 = vmatprep.subr.bf16.mxu0 0
    %617 = vmatpush1.bf16.msra.mxu0 %v570
    %618 = vmatprep.subr.bf16.mxu0 0
    %619 = vmatpush1.bf16.msra.mxu0 %v571
    %620 = vmatprep.mubr.bf16.mxu0 %v459
    %621 = vmatmul.mubr.bf16.gmra.mrb[0].mxu0 %v458
    %v622 = vpop.f32.mrb[0].mxu0
    %v623 = vadd.f32 0.0, %v622
    %v624 = vpop.f32.mrb[0].mxu0
    %v625 = vpop.f32.mrb[0].mxu0
    %v626 = vadd.f32 0.0, %v625
    %v627 = vpop.f32.mrb[0].mxu0
    %628 = vdwg.mxu0
    %v629 = vadd.f32 %v447, %v623
    %v630 = vadd.f32 %v450, %v626
    %s631 = scalar_lea.vmem [#allocation3], 48
    %v632 = vld [vmem:[%s631] sm:$0xff]
    %v633 = vld [vmem:[%s631 + $0x8] sm:$0xff]
    %v634 = vld [vmem:[%s631 + $0x40] sm:$0xff]
    %v635 = vld [vmem:[%s631 + $0x48] sm:$0xff]
    %v636 = vpack.c.bf16 %v634, %v632
    %v637 = vpack.c.bf16 %v635, %v633
    %v638 = vld [vmem:[#allocation6 + $0x180] sm:$0xf]
    %v639 = vld [vmem:[#allocation6 + $0x184] sm:$0xf]
    %v640 = vld [vmem:[#allocation6 + $0x188] sm:$0xf]
    %v641 = vld [vmem:[#allocation6 + $0x18c] sm:$0xf]
    %v642 = vld [vmem:[#allocation6 + $0x190] sm:$0xf]
    %v643 = vld [vmem:[#allocation6 + $0x194] sm:$0xf]
    %v644 = vld [vmem:[#allocation6 + $0x198] sm:$0xf]
    %v645 = vld [vmem:[#allocation6 + $0x19c] sm:$0xf]
    %v646 = vld [vmem:[#allocation6 + $0x1a0] sm:$0xf]
    %v647 = vld [vmem:[#allocation6 + $0x1a4] sm:$0xf]
    %v648 = vld [vmem:[#allocation6 + $0x1a8] sm:$0xf]
    %v649 = vld [vmem:[#allocation6 + $0x1ac] sm:$0xf]
    %v650 = vld [vmem:[#allocation6 + $0x1b0] sm:$0xf]
    %v651 = vld [vmem:[#allocation6 + $0x1b4] sm:$0xf]
    %v652 = vld [vmem:[#allocation6 + $0x1b8] sm:$0xf]
    %v653 = vld [vmem:[#allocation6 + $0x1bc] sm:$0xf]
    %v654 = vld [vmem:[#allocation6 + $0x1c0] sm:$0xf]
    %v655 = vld [vmem:[#allocation6 + $0x1c4] sm:$0xf]
    %v656 = vld [vmem:[#allocation6 + $0x1c8] sm:$0xf]
    %v657 = vld [vmem:[#allocation6 + $0x1cc] sm:$0xf]
    %v658 = vld [vmem:[#allocation6 + $0x1d0] sm:$0xf]
    %v659 = vld [vmem:[#allocation6 + $0x1d4] sm:$0xf]
    %v660 = vld [vmem:[#allocation6 + $0x1d8] sm:$0xf]
    %v661 = vld [vmem:[#allocation6 + $0x1dc] sm:$0xf]
    %v662 = vld [vmem:[#allocation6 + $0x1e0] sm:$0xf]
    %v663 = vld [vmem:[#allocation6 + $0x1e4] sm:$0xf]
    %v664 = vld [vmem:[#allocation6 + $0x1e8] sm:$0xf]
    %v665 = vld [vmem:[#allocation6 + $0x1ec] sm:$0xf]
    %v666 = vld [vmem:[#allocation6 + $0x1f0] sm:$0xf]
    %v667 = vld [vmem:[#allocation6 + $0x1f4] sm:$0xf]
    %v668 = vld [vmem:[#allocation6 + $0x1f8] sm:$0xf]
    %v669 = vld [vmem:[#allocation6 + $0x1fc] sm:$0xf]
    %v702 = vunpack.c.l.b16 %v638
    %v703 = vunpack.c.l.b16 %v639
    %v704 = vunpack.c.l.b16 %v640
    %v705 = vunpack.c.l.b16 %v641
    %v706 = vunpack.c.l.b16 %v642
    %v707 = vunpack.c.l.b16 %v643
    %v708 = vunpack.c.l.b16 %v644
    %v709 = vunpack.c.l.b16 %v645
    %v710 = vunpack.c.l.b16 %v646
    %v711 = vunpack.c.l.b16 %v647
    %v712 = vunpack.c.l.b16 %v648
    %v713 = vunpack.c.l.b16 %v649
    %v714 = vunpack.c.l.b16 %v650
    %v715 = vunpack.c.l.b16 %v651
    %v716 = vunpack.c.l.b16 %v652
    %v717 = vunpack.c.l.b16 %v653
    %v718 = vunpack.c.l.b16 %v654
    %v719 = vunpack.c.l.b16 %v655
    %v720 = vunpack.c.l.b16 %v656
    %v721 = vunpack.c.l.b16 %v657
    %v722 = vunpack.c.l.b16 %v658
    %v723 = vunpack.c.l.b16 %v659
    %v724 = vunpack.c.l.b16 %v660
    %v725 = vunpack.c.l.b16 %v661
    %v726 = vunpack.c.l.b16 %v662
    %v727 = vunpack.c.l.b16 %v663
    %v728 = vunpack.c.l.b16 %v664
    %v729 = vunpack.c.l.b16 %v665
    %v730 = vunpack.c.l.b16 %v666
    %v731 = vunpack.c.l.b16 %v667
    %v732 = vunpack.c.l.b16 %v668
    %v733 = vunpack.c.l.b16 %v669
    %v734 = vpack.c.b16 %v703, %v702
    %v735 = vpack.c.b16 %v705, %v704
    %v736 = vpack.c.b16 %v707, %v706
    %v737 = vpack.c.b16 %v709, %v708
    %v738 = vpack.c.b16 %v711, %v710
    %v739 = vpack.c.b16 %v713, %v712
    %v740 = vpack.c.b16 %v715, %v714
    %v741 = vpack.c.b16 %v717, %v716
    %v742 = vpack.c.b16 %v719, %v718
    %v743 = vpack.c.b16 %v721, %v720
    %v744 = vpack.c.b16 %v723, %v722
    %v745 = vpack.c.b16 %v725, %v724
    %v746 = vpack.c.b16 %v727, %v726
    %v747 = vpack.c.b16 %v729, %v728
    %v748 = vpack.c.b16 %v731, %v730
    %v749 = vpack.c.b16 %v733, %v732
    %766 = vmatprep.subr.bf16.mxu0 0
    %767 = vmatpush1.bf16.msra.mxu0 %v734
    %768 = vmatprep.subr.bf16.mxu0 0
    %769 = vmatpush1.bf16.msra.mxu0 %v735
    %770 = vmatprep.subr.bf16.mxu0 0
    %771 = vmatpush1.bf16.msra.mxu0 %v736
    %772 = vmatprep.subr.bf16.mxu0 0
    %773 = vmatpush1.bf16.msra.mxu0 %v737
    %774 = vmatprep.subr.bf16.mxu0 0
    %775 = vmatpush1.bf16.msra.mxu0 %v738
    %776 = vmatprep.subr.bf16.mxu0 0
    %777 = vmatpush1.bf16.msra.mxu0 %v739
    %778 = vmatprep.subr.bf16.mxu0 0
    %779 = vmatpush1.bf16.msra.mxu0 %v740
    %780 = vmatprep.subr.bf16.mxu0 0
    %781 = vmatpush1.bf16.msra.mxu0 %v741
    %782 = vmatprep.subr.bf16.mxu0 0
    %783 = vmatpush1.bf16.msra.mxu0 %v742
    %784 = vmatprep.subr.bf16.mxu0 0
    %785 = vmatpush1.bf16.msra.mxu0 %v743
    %786 = vmatprep.subr.bf16.mxu0 0
    %787 = vmatpush1.bf16.msra.mxu0 %v744
    %788 = vmatprep.subr.bf16.mxu0 0
    %789 = vmatpush1.bf16.msra.mxu0 %v745
    %790 = vmatprep.subr.bf16.mxu0 0
    %791 = vmatpush1.bf16.msra.mxu0 %v746
    %792 = vmatprep.subr.bf16.mxu0 0
    %793 = vmatpush1.bf16.msra.mxu0 %v747
    %794 = vmatprep.subr.bf16.mxu0 0
    %795 = vmatpush1.bf16.msra.mxu0 %v748
    %796 = vmatprep.subr.bf16.mxu0 0
    %797 = vmatpush1.bf16.msra.mxu0 %v749
    %798 = vmatprep.mubr.bf16.mxu0 %v637
    %799 = vmatmul.mubr.bf16.gmra.mrb[0].mxu0 %v636
    %v800 = vpop.f32.mrb[0].mxu0
    %v801 = vadd.f32 0.0, %v800
    %v802 = vpop.f32.mrb[0].mxu0
    %v803 = vpop.f32.mrb[0].mxu0
    %v804 = vadd.f32 0.0, %v803
    %v805 = vpop.f32.mrb[0].mxu0
    %806 = vdwg.mxu0
    %v807 = vadd.f32 %v629, %v801
    %v808 = vadd.f32 %v630, %v804
    %v809 = vld [vmem:[%s2] sm:$0x1]
    %v811 = vlaneseq
    %v812 = vshrl.u32 %v811, 7
    %v813 = vsub.s32 0, %v812
    %v814 = vrot.slane %v809, %v813
    %v816 = vadd.f32 %v807, %v814
    %v817 = vadd.f32 %v808, %v814
    %v818 = vmax.f32 %v816, 0.0
    %v819 = vmax.f32 %v817, 0.0
    %v820 = vpack.c.bf16 %v819, %v818
    %v821 = vld [vmem:[#allocation8] sm:$0xf]
    %v822 = vld [vmem:[#allocation8 + $0x4] sm:$0xf]
    %v823 = vld [vmem:[#allocation8 + $0x8] sm:$0xf]
    %v824 = vld [vmem:[#allocation8 + $0xc] sm:$0xf]
    %v825 = vld [vmem:[#allocation8 + $0x10] sm:$0xf]
    %v826 = vld [vmem:[#allocation8 + $0x14] sm:$0xf]
    %v827 = vld [vmem:[#allocation8 + $0x18] sm:$0xf]
    %v828 = vld [vmem:[#allocation8 + $0x1c] sm:$0xf]
    %v829 = vld [vmem:[#allocation8 + $0x20] sm:$0xf]
    %v830 = vld [vmem:[#allocation8 + $0x24] sm:$0xf]
    %v831 = vld [vmem:[#allocation8 + $0x28] sm:$0xf]
    %v832 = vld [vmem:[#allocation8 + $0x2c] sm:$0xf]
    %v833 = vld [vmem:[#allocation8 + $0x30] sm:$0xf]
    %v834 = vld [vmem:[#allocation8 + $0x34] sm:$0xf]
    %v835 = vld [vmem:[#allocation8 + $0x38] sm:$0xf]
    %v836 = vld [vmem:[#allocation8 + $0x3c] sm:$0xf]
    %v837 = vld [vmem:[%s4] sm:$0x1]
    %v839 = vlaneseq
    %v840 = vshrl.u32 %v839, 7
    %v841 = vsub.s32 0, %v840
    %v842 = vrot.slane %v837, %v841
    %v860 = vunpack.c.l.b16 %v821
    %v861 = vunpack.c.l.b16 %v822
    %v862 = vunpack.c.l.b16 %v823
    %v863 = vunpack.c.l.b16 %v824
    %v864 = vunpack.c.l.b16 %v825
    %v865 = vunpack.c.l.b16 %v826
    %v866 = vunpack.c.l.b16 %v827
    %v867 = vunpack.c.l.b16 %v828
    %v868 = vunpack.c.l.b16 %v829
    %v869 = vunpack.c.l.b16 %v830
    %v870 = vunpack.c.l.b16 %v831
    %v871 = vunpack.c.l.b16 %v832
    %v872 = vunpack.c.l.b16 %v833
    %v873 = vunpack.c.l.b16 %v834
    %v874 = vunpack.c.l.b16 %v835
    %v875 = vunpack.c.l.b16 %v836
    %v876 = vpack.c.b16 %v861, %v860
    %v877 = vpack.c.b16 %v863, %v862
    %v878 = vpack.c.b16 %v865, %v864
    %v879 = vpack.c.b16 %v867, %v866
    %v880 = vpack.c.b16 %v869, %v868
    %v881 = vpack.c.b16 %v871, %v870
    %v882 = vpack.c.b16 %v873, %v872
    %v883 = vpack.c.b16 %v875, %v874
    %892 = vmatprep.subr.bf16.mxu0 0
    %893 = vmatpush1.bf16.msra.mxu0 %v876
    %894 = vmatprep.subr.bf16.mxu0 0
    %895 = vmatpush1.bf16.msra.mxu0 %v877
    %896 = vmatprep.subr.bf16.mxu0 0
    %897 = vmatpush1.bf16.msra.mxu0 %v878
    %898 = vmatprep.subr.bf16.mxu0 0
    %899 = vmatpush1.bf16.msra.mxu0 %v879
    %900 = vmatprep.subr.bf16.mxu0 0
    %901 = vmatpush1.bf16.msra.mxu0 %v880
    %902 = vmatprep.subr.bf16.mxu0 0
    %903 = vmatpush1.bf16.msra.mxu0 %v881
    %904 = vmatprep.subr.bf16.mxu0 0
    %905 = vmatpush1.bf16.msra.mxu0 %v882
    %906 = vmatprep.subr.bf16.mxu0 0
    %907 = vmatpush1.bf16.msra.mxu0 %v883
    %908 = vmatprep.subr.bf16.mxu0 0
    %909 = vmatpush1.bf16.msra.mxu0 0
    %910 = vmatprep.subr.bf16.mxu0 0
    %911 = vmatpush1.bf16.msra.mxu0 0
    %912 = vmatprep.subr.bf16.mxu0 0
    %913 = vmatpush1.bf16.msra.mxu0 0
    %914 = vmatprep.subr.bf16.mxu0 0
    %915 = vmatpush1.bf16.msra.mxu0 0
    %916 = vmatprep.subr.bf16.mxu0 0
    %917 = vmatpush1.bf16.msra.mxu0 0
    %918 = vmatprep.subr.bf16.mxu0 0
    %919 = vmatpush1.bf16.msra.mxu0 0
    %920 = vmatprep.subr.bf16.mxu0 0
    %921 = vmatpush1.bf16.msra.mxu0 0
    %922 = vmatprep.subr.bf16.mxu0 0
    %923 = vmatpush1.bf16.msra.mxu0 0
    %924 = vmatprep.mubr.bf16.mxu0 0
    %925 = vmatmul.mubr.bf16.gmra.mrb[0].mxu0 %v820
    %v926 = vpop.f32.mrb[0].mxu0
    %v927 = vadd.f32 %v842, %v926
    %v928 = vpop.f32.mrb[0].mxu0
    %v929 = vpop.f32.mrb[0].mxu0
    %v930 = vadd.f32 %v842, %v929
    %v931 = vpop.f32.mrb[0].mxu0
    %932 = vdwg.mxu0
    %v933 = vmax.f32 %v927, 0.0
    %v934 = vmax.f32 %v930, 0.0
    %v935 = vpack.c.bf16 %v934, %v933
    %v936 = vld [vmem:[#allocation9] sm:$0xf]
    %v937 = vld [vmem:[#allocation9 + $0x4] sm:$0xf]
    %v938 = vld [vmem:[#allocation9 + $0x8] sm:$0xf]
    %v939 = vld [vmem:[#allocation9 + $0xc] sm:$0xf]
    %v940 = vld [vmem:[#allocation9 + $0x10] sm:$0xf]
    %v941 = vld [vmem:[#allocation9 + $0x14] sm:$0xf]
    %v942 = vld [vmem:[#allocation9 + $0x18] sm:$0xf]
    %v943 = vld [vmem:[#allocation9 + $0x1c] sm:$0xf]
    %v944 = vld [vmem:[#allocation9 + $0x20] sm:$0xf]
    %v945 = vld [vmem:[#allocation9 + $0x24] sm:$0xf]
    %v946 = vld [vmem:[#allocation9 + $0x28] sm:$0xf]
    %v947 = vld [vmem:[#allocation9 + $0x2c] sm:$0xf]
    %v948 = vld [vmem:[#allocation9 + $0x30] sm:$0xf]
    %v949 = vld [vmem:[#allocation9 + $0x34] sm:$0xf]
    %v950 = vld [vmem:[#allocation9 + $0x38] sm:$0xf]
    %v951 = vld [vmem:[#allocation9 + $0x3c] sm:$0xf]
    %v968 = vunpack.c.l.b16 %v936
    %v969 = vunpack.c.l.b16 %v937
    %v970 = vunpack.c.l.b16 %v938
    %v971 = vunpack.c.l.b16 %v939
    %v972 = vunpack.c.l.b16 %v940
    %v973 = vunpack.c.l.b16 %v941
    %v974 = vunpack.c.l.b16 %v942
    %v975 = vunpack.c.l.b16 %v943
    %v976 = vunpack.c.l.b16 %v944
    %v977 = vunpack.c.l.b16 %v945
    %v978 = vunpack.c.l.b16 %v946
    %v979 = vunpack.c.l.b16 %v947
    %v980 = vunpack.c.l.b16 %v948
    %v981 = vunpack.c.l.b16 %v949
    %v982 = vunpack.c.l.b16 %v950
    %v983 = vunpack.c.l.b16 %v951
    %v984 = vpack.c.b16 %v969, %v968
    %v985 = vpack.c.b16 %v971, %v970
    %v986 = vpack.c.b16 %v973, %v972
    %v987 = vpack.c.b16 %v975, %v974
    %v988 = vpack.c.b16 %v977, %v976
    %v989 = vpack.c.b16 %v979, %v978
    %v990 = vpack.c.b16 %v981, %v980
    %v991 = vpack.c.b16 %v983, %v982
    %1000 = vmatprep.subr.bf16.mxu0 0
    %1001 = vmatpush1.bf16.msra.mxu0 %v984
    %1002 = vmatprep.subr.bf16.mxu0 0
    %1003 = vmatpush1.bf16.msra.mxu0 %v985
    %1004 = vmatprep.subr.bf16.mxu0 0
    %1005 = vmatpush1.bf16.msra.mxu0 %v986
    %1006 = vmatprep.subr.bf16.mxu0 0
    %1007 = vmatpush1.bf16.msra.mxu0 %v987
    %1008 = vmatprep.subr.bf16.mxu0 0
    %1009 = vmatpush1.bf16.msra.mxu0 %v988
    %1010 = vmatprep.subr.bf16.mxu0 0
    %1011 = vmatpush1.bf16.msra.mxu0 %v989
    %1012 = vmatprep.subr.bf16.mxu0 0
    %1013 = vmatpush1.bf16.msra.mxu0 %v990
    %1014 = vmatprep.subr.bf16.mxu0 0
    %1015 = vmatpush1.bf16.msra.mxu0 %v991
    %1016 = vmatprep.subr.bf16.mxu0 0
    %1017 = vmatpush1.bf16.msra.mxu0 0
    %1018 = vmatprep.subr.bf16.mxu0 0
    %1019 = vmatpush1.bf16.msra.mxu0 0
    %1020 = vmatprep.subr.bf16.mxu0 0
    %1021 = vmatpush1.bf16.msra.mxu0 0
    %1022 = vmatprep.subr.bf16.mxu0 0
    %1023 = vmatpush1.bf16.msra.mxu0 0
    %1024 = vmatprep.subr.bf16.mxu0 0
    %1025 = vmatpush1.bf16.msra.mxu0 0
    %1026 = vmatprep.subr.bf16.mxu0 0
    %1027 = vmatpush1.bf16.msra.mxu0 0
    %1028 = vmatprep.subr.bf16.mxu0 0
    %1029 = vmatpush1.bf16.msra.mxu0 0
    %1030 = vmatprep.subr.bf16.mxu0 0
    %1031 = vmatpush1.bf16.msra.mxu0 0
    %1032 = vmatprep.mubr.bf16.mxu0 0
    %1033 = vmatmul.mubr.bf16.gmra.mrb[0].mxu0 %v935
    %v1034 = vpop.f32.mrb[0].mxu0
    %v1035 = vadd.f32 0.0, %v1034
    %v1036 = vpop.f32.mrb[0].mxu0
    %v1037 = vpop.f32.mrb[0].mxu0
    %v1038 = vadd.f32 0.0, %v1037
    %v1039 = vpop.f32.mrb[0].mxu0
    %1040 = vdwg.mxu0
    %v1041 = vadd.f32 %v818, %v1035
    %v1042 = vadd.f32 %v819, %v1038
    %v1043 = vld [vmem:[%s6] sm:$0x1]
    %v1045 = vlaneseq
    %v1046 = vshrl.u32 %v1045, 7
    %v1047 = vsub.s32 0, %v1046
    %v1048 = vrot.slane %v1043, %v1047
    %v1050 = vadd.f32 %v1041, %v1048
    %v1051 = vadd.f32 %v1042, %v1048
    %1052 = vst [vmem:[#allocation2] sm:$0xff] %v1050
    %1053 = vst [vmem:[#allocation2 + $0x10] sm:$0xff] %v1051
    %v1054 = vld [vmem:[#allocation2] ss:$2 sm:$0xf]
    %s1055 = scalar_lea.vmem [#allocation2], 1
    %v1056 = vld [vmem:[%s1055] ss:$2 sm:$0xf]
    %v1058 = vrot.slane %v1056, 7
    %vm1060 = vcmask 1040384
    %v1061 = vsel %vm1060, 0.0, %v1058
    %v1062 = vpack.c.bf16 %v1061, %v1061
    %v1063 = vld [vmem:[#allocation11] sm:$0xf]
    %v1064 = vld [vmem:[#allocation11 + $0x4] sm:$0xf]
    %v1065 = vld [vmem:[#allocation11 + $0x8] sm:$0xf]
    %v1066 = vld [vmem:[#allocation11 + $0xc] sm:$0xf]
    %v1067 = vld [vmem:[#allocation11 + $0x10] sm:$0xf]
    %v1068 = vld [vmem:[#allocation11 + $0x14] sm:$0xf]
    %v1069 = vld [vmem:[#allocation11 + $0x18] sm:$0xf]
    %v1070 = vld [vmem:[#allocation11 + $0x1c] sm:$0xf]
    %v1071 = vld [vmem:[#allocation11 + $0x20] sm:$0xf]
    %v1072 = vld [vmem:[#allocation11 + $0x24] sm:$0xf]
    %v1073 = vld [vmem:[#allocation11 + $0x28] sm:$0xf]
    %v1074 = vld [vmem:[#allocation11 + $0x2c] sm:$0xf]
    %v1075 = vld [vmem:[#allocation11 + $0x30] sm:$0xf]
    %v1076 = vld [vmem:[#allocation11 + $0x34] sm:$0xf]
    %v1077 = vld [vmem:[#allocation11 + $0x38] sm:$0xf]
    %v1078 = vld [vmem:[#allocation11 + $0x3c] sm:$0xf]
    %v1079 = vpack.c.bf16 %v1054, %v1054
    %v1080 = vld [vmem:[#allocation11 + $0x40] sm:$0xf]
    %v1081 = vld [vmem:[#allocation11 + $0x44] sm:$0xf]
    %v1082 = vld [vmem:[#allocation11 + $0x48] sm:$0xf]
    %v1083 = vld [vmem:[#allocation11 + $0x4c] sm:$0xf]
    %v1084 = vld [vmem:[#allocation11 + $0x50] sm:$0xf]
    %v1085 = vld [vmem:[#allocation11 + $0x54] sm:$0xf]
    %v1086 = vld [vmem:[#allocation11 + $0x58] sm:$0xf]
    %v1087 = vld [vmem:[#allocation11 + $0x5c] sm:$0xf]
    %v1088 = vld [vmem:[#allocation11 + $0x60] sm:$0xf]
    %v1089 = vld [vmem:[#allocation11 + $0x64] sm:$0xf]
    %v1090 = vld [vmem:[#allocation11 + $0x68] sm:$0xf]
    %v1091 = vld [vmem:[#allocation11 + $0x6c] sm:$0xf]
    %v1092 = vld [vmem:[#allocation11 + $0x70] sm:$0xf]
    %v1093 = vld [vmem:[#allocation11 + $0x74] sm:$0xf]
    %v1094 = vld [vmem:[#allocation11 + $0x78] sm:$0xf]
    %v1095 = vld [vmem:[#allocation11 + $0x7c] sm:$0xf]
    %v1112 = vunpack.c.l.b16 %v1080
    %v1113 = vunpack.c.l.b16 %v1081
    %v1114 = vunpack.c.l.b16 %v1082
    %v1115 = vunpack.c.l.b16 %v1083
    %v1116 = vunpack.c.l.b16 %v1084
    %v1117 = vunpack.c.l.b16 %v1085
    %v1118 = vunpack.c.l.b16 %v1086
    %v1119 = vunpack.c.l.b16 %v1087
    %v1120 = vunpack.c.l.b16 %v1088
    %v1121 = vunpack.c.l.b16 %v1089
    %v1122 = vunpack.c.l.b16 %v1090
    %v1123 = vunpack.c.l.b16 %v1091
    %v1124 = vunpack.c.l.b16 %v1092
    %v1125 = vunpack.c.l.b16 %v1093
    %v1126 = vunpack.c.l.b16 %v1094
    %v1127 = vunpack.c.l.b16 %v1095
    %v1128 = vpack.c.b16 %v1113, %v1112
    %v1129 = vpack.c.b16 %v1115, %v1114
    %v1130 = vpack.c.b16 %v1117, %v1116
    %v1131 = vpack.c.b16 %v1119, %v1118
    %v1132 = vpack.c.b16 %v1121, %v1120
    %v1133 = vpack.c.b16 %v1123, %v1122
    %v1134 = vpack.c.b16 %v1125, %v1124
    %v1135 = vpack.c.b16 %v1127, %v1126
    %1144 = vmatprep.subr.bf16.mxu0 0
    %1145 = vmatpush1.bf16.msra.mxu0 %v1128
    %1146 = vmatprep.subr.bf16.mxu0 0
    %1147 = vmatpush1.bf16.msra.mxu0 %v1129
    %1148 = vmatprep.subr.bf16.mxu0 0
    %1149 = vmatpush1.bf16.msra.mxu0 %v1130
    %1150 = vmatprep.subr.bf16.mxu0 0
    %1151 = vmatpush1.bf16.msra.mxu0 %v1131
    %1152 = vmatprep.subr.bf16.mxu0 0
    %1153 = vmatpush1.bf16.msra.mxu0 %v1132
    %1154 = vmatprep.subr.bf16.mxu0 0
    %1155 = vmatpush1.bf16.msra.mxu0 %v1133
    %1156 = vmatprep.subr.bf16.mxu0 0
    %1157 = vmatpush1.bf16.msra.mxu0 %v1134
    %1158 = vmatprep.subr.bf16.mxu0 0
    %1159 = vmatpush1.bf16.msra.mxu0 %v1135
    %1160 = vmatprep.subr.bf16.mxu0 0
    %1161 = vmatpush1.bf16.msra.mxu0 0
    %1162 = vmatprep.subr.bf16.mxu0 0
    %1163 = vmatpush1.bf16.msra.mxu0 0
    %1164 = vmatprep.subr.bf16.mxu0 0
    %1165 = vmatpush1.bf16.msra.mxu0 0
    %1166 = vmatprep.subr.bf16.mxu0 0
    %1167 = vmatpush1.bf16.msra.mxu0 0
    %1168 = vmatprep.subr.bf16.mxu0 0
    %1169 = vmatpush1.bf16.msra.mxu0 0
    %1170 = vmatprep.subr.bf16.mxu0 0
    %1171 = vmatpush1.bf16.msra.mxu0 0
    %1172 = vmatprep.subr.bf16.mxu0 0
    %1173 = vmatpush1.bf16.msra.mxu0 0
    %1174 = vmatprep.subr.bf16.mxu0 0
    %1175 = vmatpush1.bf16.msra.mxu0 0
    %1176 = vmatprep.mubr.bf16.mxu0 0
    %1177 = vmatmul.mubr.bf16.gmra.mrb[0].mxu0 %v1079
    %v1178 = vpop.f32.mrb[0].mxu0
    %v1179 = vadd.f32 0.0, %v1178
    %v1180 = vpop.f32.mrb[0].mxu0
    %v1181 = vpop.f32.mrb[0].mxu0
    %v1182 = vpop.f32.mrb[0].mxu0
    %1183 = vdwg.mxu0
    %v1200 = vunpack.c.l.b16 %v1063
    %v1201 = vunpack.c.l.b16 %v1064
    %v1202 = vunpack.c.l.b16 %v1065
    %v1203 = vunpack.c.l.b16 %v1066
    %v1204 = vunpack.c.l.b16 %v1067
    %v1205 = vunpack.c.l.b16 %v1068
    %v1206 = vunpack.c.l.b16 %v1069
    %v1207 = vunpack.c.l.b16 %v1070
    %v1208 = vunpack.c.l.b16 %v1071
    %v1209 = vunpack.c.l.b16 %v1072
    %v1210 = vunpack.c.l.b16 %v1073
    %v1211 = vunpack.c.l.b16 %v1074
    %v1212 = vunpack.c.l.b16 %v1075
    %v1213 = vunpack.c.l.b16 %v1076
    %v1214 = vunpack.c.l.b16 %v1077
    %v1215 = vunpack.c.l.b16 %v1078
    %v1216 = vpack.c.b16 %v1201, %v1200
    %v1217 = vpack.c.b16 %v1203, %v1202
    %v1218 = vpack.c.b16 %v1205, %v1204
    %v1219 = vpack.c.b16 %v1207, %v1206
    %v1220 = vpack.c.b16 %v1209, %v1208
    %v1221 = vpack.c.b16 %v1211, %v1210
    %v1222 = vpack.c.b16 %v1213, %v1212
    %v1223 = vpack.c.b16 %v1215, %v1214
    %1232 = vmatprep.subr.bf16.mxu0 0
    %1233 = vmatpush1.bf16.msra.mxu0 %v1216
    %1234 = vmatprep.subr.bf16.mxu0 0
    %1235 = vmatpush1.bf16.msra.mxu0 %v1217
    %1236 = vmatprep.subr.bf16.mxu0 0
    %1237 = vmatpush1.bf16.msra.mxu0 %v1218
    %1238 = vmatprep.subr.bf16.mxu0 0
    %1239 = vmatpush1.bf16.msra.mxu0 %v1219
    %1240 = vmatprep.subr.bf16.mxu0 0
    %1241 = vmatpush1.bf16.msra.mxu0 %v1220
    %1242 = vmatprep.subr.bf16.mxu0 0
    %1243 = vmatpush1.bf16.msra.mxu0 %v1221
    %1244 = vmatprep.subr.bf16.mxu0 0
    %1245 = vmatpush1.bf16.msra.mxu0 %v1222
    %1246 = vmatprep.subr.bf16.mxu0 0
    %1247 = vmatpush1.bf16.msra.mxu0 %v1223
    %1248 = vmatprep.subr.bf16.mxu0 0
    %1249 = vmatpush1.bf16.msra.mxu0 0
    %1250 = vmatprep.subr.bf16.mxu0 0
    %1251 = vmatpush1.bf16.msra.mxu0 0
    %1252 = vmatprep.subr.bf16.mxu0 0
    %1253 = vmatpush1.bf16.msra.mxu0 0
    %1254 = vmatprep.subr.bf16.mxu0 0
    %1255 = vmatpush1.bf16.msra.mxu0 0
    %1256 = vmatprep.subr.bf16.mxu0 0
    %1257 = vmatpush1.bf16.msra.mxu0 0
    %1258 = vmatprep.subr.bf16.mxu0 0
    %1259 = vmatpush1.bf16.msra.mxu0 0
    %1260 = vmatprep.subr.bf16.mxu0 0
    %1261 = vmatpush1.bf16.msra.mxu0 0
    %1262 = vmatprep.subr.bf16.mxu0 0
    %1263 = vmatpush1.bf16.msra.mxu0 0
    %1264 = vmatprep.mubr.bf16.mxu0 0
    %1265 = vmatmul.mubr.bf16.gmra.mrb[0].mxu0 %v1062
    %v1266 = vpop.f32.mrb[0].mxu0
    %v1267 = vadd.f32 %v1179, %v1266
    %v1268 = vpop.f32.mrb[0].mxu0
    %v1269 = vpop.f32.mrb[0].mxu0
    %v1270 = vpop.f32.mrb[0].mxu0
    %1271 = vdwg.mxu0
    %v1272 = vpack.c.bf16 %v1056, %v1056
    %v1273 = vld [vmem:[#allocation11 + $0x80] sm:$0xf]
    %v1274 = vld [vmem:[#allocation11 + $0x84] sm:$0xf]
    %v1275 = vld [vmem:[#allocation11 + $0x88] sm:$0xf]
    %v1276 = vld [vmem:[#allocation11 + $0x8c] sm:$0xf]
    %v1277 = vld [vmem:[#allocation11 + $0x90] sm:$0xf]
    %v1278 = vld [vmem:[#allocation11 + $0x94] sm:$0xf]
    %v1279 = vld [vmem:[#allocation11 + $0x98] sm:$0xf]
    %v1280 = vld [vmem:[#allocation11 + $0x9c] sm:$0xf]
    %v1281 = vld [vmem:[#allocation11 + $0xa0] sm:$0xf]
    %v1282 = vld [vmem:[#allocation11 + $0xa4] sm:$0xf]
    %v1283 = vld [vmem:[#allocation11 + $0xa8] sm:$0xf]
    %v1284 = vld [vmem:[#allocation11 + $0xac] sm:$0xf]
    %v1285 = vld [vmem:[#allocation11 + $0xb0] sm:$0xf]
    %v1286 = vld [vmem:[#allocation11 + $0xb4] sm:$0xf]
    %v1287 = vld [vmem:[#allocation11 + $0xb8] sm:$0xf]
    %v1288 = vld [vmem:[#allocation11 + $0xbc] sm:$0xf]
    %v1305 = vunpack.c.l.b16 %v1273
    %v1306 = vunpack.c.l.b16 %v1274
    %v1307 = vunpack.c.l.b16 %v1275
    %v1308 = vunpack.c.l.b16 %v1276
    %v1309 = vunpack.c.l.b16 %v1277
    %v1310 = vunpack.c.l.b16 %v1278
    %v1311 = vunpack.c.l.b16 %v1279
    %v1312 = vunpack.c.l.b16 %v1280
    %v1313 = vunpack.c.l.b16 %v1281
    %v1314 = vunpack.c.l.b16 %v1282
    %v1315 = vunpack.c.l.b16 %v1283
    %v1316 = vunpack.c.l.b16 %v1284
    %v1317 = vunpack.c.l.b16 %v1285
    %v1318 = vunpack.c.l.b16 %v1286
    %v1319 = vunpack.c.l.b16 %v1287
    %v1320 = vunpack.c.l.b16 %v1288
    %v1321 = vpack.c.b16 %v1306, %v1305
    %v1322 = vpack.c.b16 %v1308, %v1307
    %v1323 = vpack.c.b16 %v1310, %v1309
    %v1324 = vpack.c.b16 %v1312, %v1311
    %v1325 = vpack.c.b16 %v1314, %v1313
    %v1326 = vpack.c.b16 %v1316, %v1315
    %v1327 = vpack.c.b16 %v1318, %v1317
    %v1328 = vpack.c.b16 %v1320, %v1319
    %1337 = vmatprep.subr.bf16.mxu0 0
    %1338 = vmatpush1.bf16.msra.mxu0 %v1321
    %1339 = vmatprep.subr.bf16.mxu0 0
    %1340 = vmatpush1.bf16.msra.mxu0 %v1322
    %1341 = vmatprep.subr.bf16.mxu0 0
    %1342 = vmatpush1.bf16.msra.mxu0 %v1323
    %1343 = vmatprep.subr.bf16.mxu0 0
    %1344 = vmatpush1.bf16.msra.mxu0 %v1324
    %1345 = vmatprep.subr.bf16.mxu0 0
    %1346 = vmatpush1.bf16.msra.mxu0 %v1325
    %1347 = vmatprep.subr.bf16.mxu0 0
    %1348 = vmatpush1.bf16.msra.mxu0 %v1326
    %1349 = vmatprep.subr.bf16.mxu0 0
    %1350 = vmatpush1.bf16.msra.mxu0 %v1327
    %1351 = vmatprep.subr.bf16.mxu0 0
    %1352 = vmatpush1.bf16.msra.mxu0 %v1328
    %1353 = vmatprep.subr.bf16.mxu0 0
    %1354 = vmatpush1.bf16.msra.mxu0 0
    %1355 = vmatprep.subr.bf16.mxu0 0
    %1356 = vmatpush1.bf16.msra.mxu0 0
    %1357 = vmatprep.subr.bf16.mxu0 0
    %1358 = vmatpush1.bf16.msra.mxu0 0
    %1359 = vmatprep.subr.bf16.mxu0 0
    %1360 = vmatpush1.bf16.msra.mxu0 0
    %1361 = vmatprep.subr.bf16.mxu0 0
    %1362 = vmatpush1.bf16.msra.mxu0 0
    %1363 = vmatprep.subr.bf16.mxu0 0
    %1364 = vmatpush1.bf16.msra.mxu0 0
    %1365 = vmatprep.subr.bf16.mxu0 0
    %1366 = vmatpush1.bf16.msra.mxu0 0
    %1367 = vmatprep.subr.bf16.mxu0 0
    %1368 = vmatpush1.bf16.msra.mxu0 0
    %1369 = vmatprep.mubr.bf16.mxu0 0
    %1370 = vmatmul.mubr.bf16.gmra.mrb[0].mxu0 %v1272
    %v1371 = vpop.f32.mrb[0].mxu0
    %v1372 = vadd.f32 0.0, %v1371
    %v1373 = vpop.f32.mrb[0].mxu0
    %v1374 = vpop.f32.mrb[0].mxu0
    %v1375 = vpop.f32.mrb[0].mxu0
    %1376 = vdwg.mxu0
    %v1377 = vadd.f32 %v1267, %v1372
    %s1378 = scalar_lea.vmem [#allocation2], 16
    %v1379 = vld [vmem:[%s1378] ss:$2 sm:$0xf]
    %s1380 = scalar_lea.vmem [#allocation2], 17
    %v1381 = vld [vmem:[%s1380] ss:$2 sm:$0xf]
    %v1383 = vrot.slane %v1381, 7
    %v1385 = vsel %vm1060, 0.0, %v1383
    %v1386 = vpack.c.bf16 %v1385, %v1385
    %v1387 = vpack.c.bf16 %v1379, %v1379
    %1388 = vmatprep.subr.bf16.mxu0 0
    %1389 = vmatpush1.bf16.msra.mxu0 %v1128
    %1390 = vmatprep.subr.bf16.mxu0 0
    %1391 = vmatpush1.bf16.msra.mxu0 %v1129
    %1392 = vmatprep.subr.bf16.mxu0 0
    %1393 = vmatpush1.bf16.msra.mxu0 %v1130
    %1394 = vmatprep.subr.bf16.mxu0 0
    %1395 = vmatpush1.bf16.msra.mxu0 %v1131
    %1396 = vmatprep.subr.bf16.mxu0 0
    %1397 = vmatpush1.bf16.msra.mxu0 %v1132
    %1398 = vmatprep.subr.bf16.mxu0 0
    %1399 = vmatpush1.bf16.msra.mxu0 %v1133
    %1400 = vmatprep.subr.bf16.mxu0 0
    %1401 = vmatpush1.bf16.msra.mxu0 %v1134
    %1402 = vmatprep.subr.bf16.mxu0 0
    %1403 = vmatpush1.bf16.msra.mxu0 %v1135
    %1404 = vmatprep.subr.bf16.mxu0 0
    %1405 = vmatpush1.bf16.msra.mxu0 0
    %1406 = vmatprep.subr.bf16.mxu0 0
    %1407 = vmatpush1.bf16.msra.mxu0 0
    %1408 = vmatprep.subr.bf16.mxu0 0
    %1409 = vmatpush1.bf16.msra.mxu0 0
    %1410 = vmatprep.subr.bf16.mxu0 0
    %1411 = vmatpush1.bf16.msra.mxu0 0
    %1412 = vmatprep.subr.bf16.mxu0 0
    %1413 = vmatpush1.bf16.msra.mxu0 0
    %1414 = vmatprep.subr.bf16.mxu0 0
    %1415 = vmatpush1.bf16.msra.mxu0 0
    %1416 = vmatprep.subr.bf16.mxu0 0
    %1417 = vmatpush1.bf16.msra.mxu0 0
    %1418 = vmatprep.subr.bf16.mxu0 0
    %1419 = vmatpush1.bf16.msra.mxu0 0
    %1420 = vmatprep.mubr.bf16.mxu0 0
    %1421 = vmatmul.mubr.bf16.gmra.mrb[0].mxu0 %v1387
    %v1422 = vpop.f32.mrb[0].mxu0
    %v1423 = vadd.f32 0.0, %v1422
    %v1424 = vpop.f32.mrb[0].mxu0
    %v1425 = vpop.f32.mrb[0].mxu0
    %v1426 = vpop.f32.mrb[0].mxu0
    %1427 = vdwg.mxu0
    %1428 = vmatprep.subr.bf16.mxu0 0
    %1429 = vmatpush1.bf16.msra.mxu0 %v1216
    %1430 = vmatprep.subr.bf16.mxu0 0
    %1431 = vmatpush1.bf16.msra.mxu0 %v1217
    %1432 = vmatprep.subr.bf16.mxu0 0
    %1433 = vmatpush1.bf16.msra.mxu0 %v1218
    %1434 = vmatprep.subr.bf16.mxu0 0
    %1435 = vmatpush1.bf16.msra.mxu0 %v1219
    %1436 = vmatprep.subr.bf16.mxu0 0
    %1437 = vmatpush1.bf16.msra.mxu0 %v1220
    %1438 = vmatprep.subr.bf16.mxu0 0
    %1439 = vmatpush1.bf16.msra.mxu0 %v1221
    %1440 = vmatprep.subr.bf16.mxu0 0
    %1441 = vmatpush1.bf16.msra.mxu0 %v1222
    %1442 = vmatprep.subr.bf16.mxu0 0
    %1443 = vmatpush1.bf16.msra.mxu0 %v1223
    %1444 = vmatprep.subr.bf16.mxu0 0
    %1445 = vmatpush1.bf16.msra.mxu0 0
    %1446 = vmatprep.subr.bf16.mxu0 0
    %1447 = vmatpush1.bf16.msra.mxu0 0
    %1448 = vmatprep.subr.bf16.mxu0 0
    %1449 = vmatpush1.bf16.msra.mxu0 0
    %1450 = vmatprep.subr.bf16.mxu0 0
    %1451 = vmatpush1.bf16.msra.mxu0 0
    %1452 = vmatprep.subr.bf16.mxu0 0
    %1453 = vmatpush1.bf16.msra.mxu0 0
    %1454 = vmatprep.subr.bf16.mxu0 0
    %1455 = vmatpush1.bf16.msra.mxu0 0
    %1456 = vmatprep.subr.bf16.mxu0 0
    %1457 = vmatpush1.bf16.msra.mxu0 0
    %1458 = vmatprep.subr.bf16.mxu0 0
    %1459 = vmatpush1.bf16.msra.mxu0 0
    %1460 = vmatprep.mubr.bf16.mxu0 0
    %1461 = vmatmul.mubr.bf16.gmra.mrb[0].mxu0 %v1386
    %v1462 = vpop.f32.mrb[0].mxu0
    %v1463 = vadd.f32 %v1423, %v1462
    %v1464 = vpop.f32.mrb[0].mxu0
    %v1465 = vpop.f32.mrb[0].mxu0
    %v1466 = vpop.f32.mrb[0].mxu0
    %1467 = vdwg.mxu0
    %v1468 = vpack.c.bf16 %v1381, %v1381
    %1469 = vmatprep.subr.bf16.mxu0 0
    %1470 = vmatpush1.bf16.msra.mxu0 %v1321
    %1471 = vmatprep.subr.bf16.mxu0 0
    %1472 = vmatpush1.bf16.msra.mxu0 %v1322
    %1473 = vmatprep.subr.bf16.mxu0 0
    %1474 = vmatpush1.bf16.msra.mxu0 %v1323
    %1475 = vmatprep.subr.bf16.mxu0 0
    %1476 = vmatpush1.bf16.msra.mxu0 %v1324
    %1477 = vmatprep.subr.bf16.mxu0 0
    %1478 = vmatpush1.bf16.msra.mxu0 %v1325
    %1479 = vmatprep.subr.bf16.mxu0 0
    %1480 = vmatpush1.bf16.msra.mxu0 %v1326
    %1481 = vmatprep.subr.bf16.mxu0 0
    %1482 = vmatpush1.bf16.msra.mxu0 %v1327
    %1483 = vmatprep.subr.bf16.mxu0 0
    %1484 = vmatpush1.bf16.msra.mxu0 %v1328
    %1485 = vmatprep.subr.bf16.mxu0 0
    %1486 = vmatpush1.bf16.msra.mxu0 0
    %1487 = vmatprep.subr.bf16.mxu0 0
    %1488 = vmatpush1.bf16.msra.mxu0 0
    %1489 = vmatprep.subr.bf16.mxu0 0
    %1490 = vmatpush1.bf16.msra.mxu0 0
    %1491 = vmatprep.subr.bf16.mxu0 0
    %1492 = vmatpush1.bf16.msra.mxu0 0
    %1493 = vmatprep.subr.bf16.mxu0 0
    %1494 = vmatpush1.bf16.msra.mxu0 0
    %1495 = vmatprep.subr.bf16.mxu0 0
    %1496 = vmatpush1.bf16.msra.mxu0 0
    %1497 = vmatprep.subr.bf16.mxu0 0
    %1498 = vmatpush1.bf16.msra.mxu0 0
    %1499 = vmatprep.subr.bf16.mxu0 0
    %1500 = vmatpush1.bf16.msra.mxu0 0
    %1501 = vmatprep.mubr.bf16.mxu0 0
    %1502 = vmatmul.mubr.bf16.gmra.mrb[0].mxu0 %v1468
    %v1503 = vpop.f32.mrb[0].mxu0
    %v1504 = vadd.f32 0.0, %v1503
    %v1505 = vpop.f32.mrb[0].mxu0
    %v1506 = vpop.f32.mrb[0].mxu0
    %v1507 = vpop.f32.mrb[0].mxu0
    %1508 = vdwg.mxu0
    %v1509 = vadd.f32 %v1463, %v1504
    %v1511 = vrot.slane %v1509, 4
    %vm1513 = vcmask 1043456
    %v1514 = vsel %vm1513, %v1377, %v1511
    %v1515 = vld [vmem:[%s8] sm:$0x1]
    %v1517 = vlaneseq
    %v1518 = vshrl.u32 %v1517, 7
    %v1519 = vsub.s32 0, %v1518
    %v1520 = vrot.slane %v1515, %v1519
    %v1522 = vadd.f32 %v1514, %v1520
    %1523 = vst [vmem:[#allocation12] sm:$0xff] %v1522
    // Predicated region
    $region58: #{tpu_custom_call.1} parent=1 // pred_check
      _
    $region59: #{tpu_custom_call.1} parent=1 // pred_check_branch
      %1525 = sbr.rel (0) target = $region61
    $region60: #{tpu_custom_call.1} parent=1 // pred_region
      %s1527 = ssub.s32 128, 128
      %1528 = vsyncadd [#allocation5], %s1527
      %s1530 = sshll.u32 [#allocation12], 4
      %s1531 = int_to_ptr.vmem [resolvable:$true] %s1530
      %1533 = dma.vmem_to_hbm [thread:$0]  %s1531, 128, %s9, [#allocation5]
    $region61: #{tpu_custom_call.1} parent=1 // pred_fallthru
      _
    // Predicated region
    $region62: #{tpu_custom_call.1} parent=1 // pred_check
      _
    $region63: #{tpu_custom_call.1} parent=1 // pred_check_branch
      %1535 = sbr.rel (0) target = $region65
    $region64: #{tpu_custom_call.1} parent=1 // pred_region
      %1536 = dma.done [#allocation5], 128
    $region65: #{tpu_custom_call.1} parent=1 // pred_fallthru
      _
    %1537 = vsyncpa [#allocation4], 1
    %1538 = vsyncpa [#allocation7], 1
    %1539 = vsyncpa [#allocation10], 1
    %1540 = vsyncpa [#allocation5], 1

</llo_original>
